<compile_context>
chip_gen: v7x
topology: tpu7x:2x2x1
jax: 0.10.0
libtpu: 0.0.40
codegen_flags: <defaults>
</compile_context>

<pallas_src>
import functools

import jax
import jax.numpy as jnp
from jax.experimental import pallas as pl
from jax.experimental.pallas import tpu as pltpu

EPS = 1e-5        # nn.BatchNorm2d default
C_LANE = 128      # lane width: pad COUT to this for lane-dense outputs
ROW_TILE = 256    # rows per program in the BN+ReLU pass


# ----------------------------------------------------------------------------
# Pass 1: per-image im2col conv (single MXU matmul) + fused BN statistics.
# ----------------------------------------------------------------------------
def conv_im2col_stats_kernel(x_ref, w_ref, mask_ref, y_ref, stats_ref,
                             *, KH, KW, W, n_rows):
    # x_ref:     (1, HWP, CIN)   spatially flattened (row-major H,W) image,
    #                            zero-padded rows at the end.
    # w_ref:     (KH*KW*CIN, C_PAD) im2col weight.
    # mask_ref:  (n_rows, 1)     1.0 where the wide-output column is valid.
    # y_ref:     (1, n_rows, C_PAD) "wide" conv output (n_rows = OH*W;
    #                            columns ow >= OW are junk, discarded later).
    # stats_ref: (1, 2, C_PAD)   per-image [sum, sum_sq] over valid outputs.
    taps = []
    for kh in range(KH):
        for kw in range(KW):
            off = kh * W + kw                              # static offset
            taps.append(x_ref[0, off:off + n_rows, :])     # (n_rows, CIN)
    patches = jnp.concatenate(taps, axis=-1)               # (n_rows, KH*KW*CIN)
    y = jnp.dot(patches, w_ref[...],
                preferred_element_type=jnp.float32)        # (n_rows, C_PAD)
    y_ref[0] = y                                           # lane-dense store

    yv = y * mask_ref[...]                                 # zero invalid columns
    stats_ref[0, 0:1, :] = jnp.sum(yv, axis=0, keepdims=True)
    stats_ref[0, 1:2, :] = jnp.sum(yv * yv, axis=0, keepdims=True)


# ----------------------------------------------------------------------------
# Pass 2: streamed BatchNorm (training-mode batch stats, biased var) + ReLU.
# ----------------------------------------------------------------------------
def bn_relu_kernel(y_ref, stats_ref, g_ref, b_ref, o_ref, *, eps, inv_count):
    # y_ref/o_ref: (ROW_TILE, C_PAD); stats_ref: (N, 2, C_PAD); g/b: (1, C_PAD)
    tot = jnp.sum(stats_ref[...], axis=0)                  # (2, C_PAD) reduce partials
    mean = tot[0:1, :] * inv_count                         # batch mean
    var = tot[1:2, :] * inv_count - mean * mean            # biased batch variance
    inv_std = jax.lax.rsqrt(var + eps)
    scale = g_ref[...] * inv_std
    shift = b_ref[...] - mean * scale
    o_ref[...] = jnp.maximum(y_ref[...] * scale + shift, 0.0)


@jax.jit
def conv_bn_relu(x_nchw, w_oihw, conv_bias, gamma, beta):
    """Forward of ConvBNReLU. x_nchw: (N, CIN, H, W) -> (N, COUT, OH, OW)."""
    N, CIN, H, W = x_nchw.shape
    COUT, _, KH, KW = w_oihw.shape
    OH, OW = H - KH + 1, W - KW + 1                  # stride 1, no padding
    C_PAD = ((COUT + C_LANE - 1) // C_LANE) * C_LANE
    n_rows = OH * W                                  # wide rows per image
    HWP = -(-(H * W + KW - 1) // 8) * 8              # flat rows + tap overrun, 8-aligned

    # ---- boundary glue (layout only) ---------------------------------------
    del conv_bias  # exactly cancelled by training-mode BN batch-mean subtraction
    x = jnp.transpose(x_nchw, (0, 2, 3, 1)).astype(jnp.float32)   # NHWC
    x = x.reshape(N, H * W, CIN)
    x = jnp.pad(x, ((0, 0), (0, HWP - H * W), (0, 0)))            # (N, HWP, CIN)
    w = jnp.transpose(w_oihw, (2, 3, 1, 0)).astype(jnp.float32)   # HWIO
    w = w.reshape(KH * KW * CIN, COUT)
    w = jnp.pad(w, ((0, 0), (0, C_PAD - COUT)))                   # (KH*KW*CIN, C_PAD)
    g = jnp.pad(gamma.astype(jnp.float32), (0, C_PAD - COUT)).reshape(1, C_PAD)
    b = jnp.pad(beta.astype(jnp.float32), (0, C_PAD - COUT)).reshape(1, C_PAD)
    # validity mask of the wide-output columns (ow < OW)
    mask = (jnp.arange(n_rows) % W < OW).astype(jnp.float32).reshape(n_rows, 1)

    # ---- pass 1: conv (one matmul / image) + fused BN statistics -----------
    y_wide, stats = pl.pallas_call(
        functools.partial(conv_im2col_stats_kernel,
                          KH=KH, KW=KW, W=W, n_rows=n_rows),
        grid=(N,),
        in_specs=[
            pl.BlockSpec((1, HWP, CIN), lambda n: (n, 0, 0)),
            pl.BlockSpec((KH * KW * CIN, C_PAD), lambda n: (0, 0)),
            pl.BlockSpec((n_rows, 1), lambda n: (0, 0)),
        ],
        out_specs=(
            pl.BlockSpec((1, n_rows, C_PAD), lambda n: (n, 0, 0)),
            pl.BlockSpec((1, 2, C_PAD), lambda n: (n, 0, 0)),
        ),
        out_shape=(
            jax.ShapeDtypeStruct((N, n_rows, C_PAD), jnp.float32),
            jax.ShapeDtypeStruct((N, 2, C_PAD), jnp.float32),
        ),
        compiler_params=pltpu.CompilerParams(dimension_semantics=("parallel",)),
    )(x, w, mask)

    # ---- pass 2: tiled, streamed BN(train) + ReLU ---------------------------
    R = N * n_rows
    y2d = y_wide.reshape(R, C_PAD)               # leading-dim merge, no data movement
    inv_count = 1.0 / float(N * OH * OW)
    out2d = pl.pallas_call(
        functools.partial(bn_relu_kernel, eps=EPS, inv_count=inv_count),
        grid=(pl.cdiv(R, ROW_TILE),),
        in_specs=[
            pl.BlockSpec((ROW_TILE, C_PAD), lambda r: (r, 0)),
            pl.BlockSpec((N, 2, C_PAD), lambda r: (0, 0, 0)),
            pl.BlockSpec((1, C_PAD), lambda r: (0, 0)),
            pl.BlockSpec((1, C_PAD), lambda r: (0, 0)),
        ],
        out_specs=pl.BlockSpec((ROW_TILE, C_PAD), lambda r: (r, 0)),
        out_shape=jax.ShapeDtypeStruct((R, C_PAD), jnp.float32),
        compiler_params=pltpu.CompilerParams(dimension_semantics=("parallel",)),
    )(y2d, stats, g, b)

    # ---- boundary glue: drop wide/pad columns, back to NCHW (per spec) ------
    out = out2d.reshape(N, OH, W, C_PAD)[:, :, :OW, :COUT]
    return jnp.transpose(out, (0, 3, 1, 2))


def _reference(x_nchw, w_oihw, bias, gamma, beta, eps=EPS):
    conv = jax.lax.conv_general_dilated(
        x_nchw.astype(jnp.float32), w_oihw.astype(jnp.float32),
        window_strides=(1, 1), padding="VALID",
        dimension_numbers=("NCHW", "OIHW", "NCHW"))
    conv = conv + bias.reshape(1, -1, 1, 1)
    mean = jnp.mean(conv, axis=(0, 2, 3), keepdims=True)
    var = jnp.mean((conv - mean) ** 2, axis=(0, 2, 3), keepdims=True)
    y = (conv - mean) * jax.lax.rsqrt(var + eps)
    y = y * gamma.reshape(1, -1, 1, 1) + beta.reshape(1, -1, 1, 1)
    return jnp.maximum(y, 0.0)


if __name__ == "__main__":
    # Small shapes consistent with ConvBNReLU(in_channel=4, out_channel=8, k=3, s=1, p=0).
    N, CIN, H, W = 2, 4, 16, 16
    COUT, KH, KW = 8, 3, 3

    key = jax.random.PRNGKey(0)
    k_x, k_w, k_b, k_g, k_be = jax.random.split(key, 5)

    x = jax.random.normal(k_x, (N, CIN, H, W), jnp.float32)
    conv_w = jax.random.normal(k_w, (COUT, CIN, KH, KW), jnp.float32) * 0.1
    conv_b = jax.random.normal(k_b, (COUT,), jnp.float32) * 0.1
    bn_gamma = jax.random.uniform(k_g, (COUT,), jnp.float32, 0.5, 1.5)
    bn_beta = jax.random.normal(k_be, (COUT,), jnp.float32) * 0.1

    out = conv_bn_relu(x, conv_w, conv_b, bn_gamma, bn_beta)
    out = jax.block_until_ready(out)

    assert out.shape == (N, COUT, H - KH + 1, W - KW + 1), out.shape

    ref = _reference(x, conv_w, conv_b, bn_gamma, bn_beta)
    if not jnp.allclose(out, ref, atol=1e-4, rtol=1e-4):
        max_err = float(jnp.max(jnp.abs(out - ref)))
        raise AssertionError(f"Pallas ConvBNReLU mismatch, max abs err = {max_err}")

    print("KERNEL_OK")
</pallas_src>

<mosaic_0001>
module attributes {stable_mosaic.version = 11 : i64} {
  func.func @conv_im2col_stats_kernel(%arg0: i32, %arg1: memref<1x264x4xf32, #tpu.memory_space<vmem>>, %arg2: memref<36x128xf32, #tpu.memory_space<vmem>>, %arg3: memref<224x1xf32, #tpu.memory_space<vmem>>, %arg4: memref<1x224x128xf32, #tpu.memory_space<vmem>>, %arg5: memref<1x2x128xf32, #tpu.memory_space<vmem>>) attributes {dimension_semantics = [#tpu.dimension_semantics<parallel>], iteration_bounds = array<i64: 2>, scalar_prefetch = 0 : i64, scratch_operands = 0 : i64, tpu.core_type = #tpu.core_type<tc>, window_params = [{transform_indices = @transform_0, window_bounds = array<i64: 1, 264, 4>}, {pipeline_mode = #tpu.pipeline_mode<synchronous>, transform_indices = @transform_1, window_bounds = array<i64: 36, 128>}, {pipeline_mode = #tpu.pipeline_mode<synchronous>, transform_indices = @transform_2, window_bounds = array<i64: 224, 1>}, {transform_indices = @transform_3, window_bounds = array<i64: 1, 224, 128>}, {transform_indices = @transform_4, window_bounds = array<i64: 1, 2, 128>}]} {
    %c0 = arith.constant 0 : index
    %c0_0 = arith.constant 0 : index
    %c0_1 = arith.constant 0 : index
    %0 = vector.load %arg1[%c0, %c0_0, %c0_1] : memref<1x264x4xf32, #tpu.memory_space<vmem>>, vector<1x224x4xf32>
    %1 = vector.shape_cast %0 : vector<1x224x4xf32> to vector<224x4xf32>
    %c0_2 = arith.constant 0 : index
    %c1 = arith.constant 1 : index
    %c0_3 = arith.constant 0 : index
    %2 = vector.load %arg1[%c0_2, %c1, %c0_3] : memref<1x264x4xf32, #tpu.memory_space<vmem>>, vector<1x224x4xf32>
    %3 = vector.shape_cast %2 : vector<1x224x4xf32> to vector<224x4xf32>
    %c0_4 = arith.constant 0 : index
    %c2 = arith.constant 2 : index
    %c0_5 = arith.constant 0 : index
    %4 = vector.load %arg1[%c0_4, %c2, %c0_5] : memref<1x264x4xf32, #tpu.memory_space<vmem>>, vector<1x224x4xf32>
    %5 = vector.shape_cast %4 : vector<1x224x4xf32> to vector<224x4xf32>
    %c0_6 = arith.constant 0 : index
    %c16 = arith.constant 16 : index
    %c0_7 = arith.constant 0 : index
    %6 = vector.load %arg1[%c0_6, %c16, %c0_7] : memref<1x264x4xf32, #tpu.memory_space<vmem>>, vector<1x224x4xf32>
    %7 = vector.shape_cast %6 : vector<1x224x4xf32> to vector<224x4xf32>
    %c0_8 = arith.constant 0 : index
    %c17 = arith.constant 17 : index
    %c0_9 = arith.constant 0 : index
    %8 = vector.load %arg1[%c0_8, %c17, %c0_9] : memref<1x264x4xf32, #tpu.memory_space<vmem>>, vector<1x224x4xf32>
    %9 = vector.shape_cast %8 : vector<1x224x4xf32> to vector<224x4xf32>
    %c0_10 = arith.constant 0 : index
    %c18 = arith.constant 18 : index
    %c0_11 = arith.constant 0 : index
    %10 = vector.load %arg1[%c0_10, %c18, %c0_11] : memref<1x264x4xf32, #tpu.memory_space<vmem>>, vector<1x224x4xf32>
    %11 = vector.shape_cast %10 : vector<1x224x4xf32> to vector<224x4xf32>
    %c0_12 = arith.constant 0 : index
    %c32 = arith.constant 32 : index
    %c0_13 = arith.constant 0 : index
    %12 = vector.load %arg1[%c0_12, %c32, %c0_13] : memref<1x264x4xf32, #tpu.memory_space<vmem>>, vector<1x224x4xf32>
    %13 = vector.shape_cast %12 : vector<1x224x4xf32> to vector<224x4xf32>
    %c0_14 = arith.constant 0 : index
    %c33 = arith.constant 33 : index
    %c0_15 = arith.constant 0 : index
    %14 = vector.load %arg1[%c0_14, %c33, %c0_15] : memref<1x264x4xf32, #tpu.memory_space<vmem>>, vector<1x224x4xf32>
    %15 = vector.shape_cast %14 : vector<1x224x4xf32> to vector<224x4xf32>
    %c0_16 = arith.constant 0 : index
    %c34 = arith.constant 34 : index
    %c0_17 = arith.constant 0 : index
    %16 = vector.load %arg1[%c0_16, %c34, %c0_17] : memref<1x264x4xf32, #tpu.memory_space<vmem>>, vector<1x224x4xf32>
    %17 = vector.shape_cast %16 : vector<1x224x4xf32> to vector<224x4xf32>
    %18 = tpu.concatenate %1, %3, %5, %7, %9, %11, %13, %15, %17 in 1 : vector<224x4xf32>, vector<224x4xf32>, vector<224x4xf32>, vector<224x4xf32>, vector<224x4xf32>, vector<224x4xf32>, vector<224x4xf32>, vector<224x4xf32>, vector<224x4xf32> -> vector<224x36xf32>
    %c0_18 = arith.constant 0 : index
    %c0_19 = arith.constant 0 : index
    %19 = vector.load %arg2[%c0_18, %c0_19] : memref<36x128xf32, #tpu.memory_space<vmem>>, vector<36x128xf32>
    %cst = arith.constant dense<0.000000e+00> : vector<224x128xf32>
    %20 = tpu.matmul %18, %19, %cst {dimension_numbers = #tpu.dot_dimension_numbers<[1], [0], [0], [1], [0, 0, 1, 1], [], []>} : vector<224x36xf32>, vector<36x128xf32>, vector<224x128xf32> -> vector<224x128xf32>
    %c0_20 = arith.constant 0 : index
    %c0_21 = arith.constant 0 : index
    %c0_22 = arith.constant 0 : index
    %21 = vector.load %arg4[%c0_20, %c0_21, %c0_22] : memref<1x224x128xf32, #tpu.memory_space<vmem>>, vector<1x224x128xf32>
    %22 = vector.shape_cast %21 : vector<1x224x128xf32> to vector<224x128xf32>
    %23 = vector.shape_cast %20 : vector<224x128xf32> to vector<1x224x128xf32>
    tpu.vector_store %arg4[%c0_20, %c0_21, %c0_22], %23 {strides = array<i32>} : memref<1x224x128xf32, #tpu.memory_space<vmem>>, vector<1x224x128xf32>,
    %c0_23 = arith.constant 0 : index
    %c0_24 = arith.constant 0 : index
    %24 = vector.load %arg3[%c0_23, %c0_24] : memref<224x1xf32, #tpu.memory_space<vmem>>, vector<224x1xf32>
    %25 = vector.broadcast %24 : vector<224x1xf32> to vector<224x128xf32>
    %26 = arith.mulf %20, %25 : vector<224x128xf32>
    %cst_25 = arith.constant dense<0.000000e+00> : vector<128xf32>
    %27 = vector.multi_reduction <add>, %26, %cst_25 [0] : vector<224x128xf32> to vector<128xf32>
    %28 = vector.shape_cast %27 : vector<128xf32> to vector<1x128xf32>
    %c0_26 = arith.constant 0 : index
    %c0_27 = arith.constant 0 : index
    %c0_28 = arith.constant 0 : index
    %29 = vector.load %arg5[%c0_26, %c0_27, %c0_28] : memref<1x2x128xf32, #tpu.memory_space<vmem>>, vector<1x1x128xf32>
    %30 = vector.shape_cast %29 : vector<1x1x128xf32> to vector<1x128xf32>
    %31 = vector.shape_cast %28 : vector<1x128xf32> to vector<1x1x128xf32>
    tpu.vector_store %arg5[%c0_26, %c0_27, %c0_28], %31 {strides = array<i32>} : memref<1x2x128xf32, #tpu.memory_space<vmem>>, vector<1x1x128xf32>,
    %32 = arith.mulf %26, %26 : vector<224x128xf32>
    %cst_29 = arith.constant dense<0.000000e+00> : vector<128xf32>
    %33 = vector.multi_reduction <add>, %32, %cst_29 [0] : vector<224x128xf32> to vector<128xf32>
    %34 = vector.shape_cast %33 : vector<128xf32> to vector<1x128xf32>
    %c0_30 = arith.constant 0 : index
    %c1_31 = arith.constant 1 : index
    %c0_32 = arith.constant 0 : index
    %35 = vector.load %arg5[%c0_30, %c1_31, %c0_32] : memref<1x2x128xf32, #tpu.memory_space<vmem>>, vector<1x1x128xf32>
    %36 = vector.shape_cast %35 : vector<1x1x128xf32> to vector<1x128xf32>
    %37 = vector.shape_cast %34 : vector<1x128xf32> to vector<1x1x128xf32>
    tpu.vector_store %arg5[%c0_30, %c1_31, %c0_32], %37 {strides = array<i32>} : memref<1x2x128xf32, #tpu.memory_space<vmem>>, vector<1x1x128xf32>,
    return
  }
  func.func @transform_0(%arg0: i32) -> (i32, i32, i32) {
    %c0_i32 = arith.constant 0 : i32
    %c0_i32_0 = arith.constant 0 : i32
    %c0_i32_1 = arith.constant 0 : i32
    return %arg0, %c0_i32, %c0_i32_0 : i32, i32, i32
  }
  func.func @transform_1(%arg0: i32) -> (i32, i32) {
    %c0_i32 = arith.constant 0 : i32
    %c0_i32_0 = arith.constant 0 : i32
    %c0_i32_1 = arith.constant 0 : i32
    return %c0_i32, %c0_i32_0 : i32, i32
  }
  func.func @transform_2(%arg0: i32) -> (i32, i32) {
    %c0_i32 = arith.constant 0 : i32
    %c0_i32_0 = arith.constant 0 : i32
    %c0_i32_1 = arith.constant 0 : i32
    return %c0_i32, %c0_i32_0 : i32, i32
  }
  func.func @transform_3(%arg0: i32) -> (i32, i32, i32) {
    %c0_i32 = arith.constant 0 : i32
    %c0_i32_0 = arith.constant 0 : i32
    %c0_i32_1 = arith.constant 0 : i32
    return %arg0, %c0_i32, %c0_i32_0 : i32, i32, i32
  }
  func.func @transform_4(%arg0: i32) -> (i32, i32, i32) {
    %c0_i32 = arith.constant 0 : i32
    %c0_i32_0 = arith.constant 0 : i32
    %c0_i32_1 = arith.constant 0 : i32
    return %arg0, %c0_i32, %c0_i32_0 : i32, i32, i32
  }
}

module attributes {stable_mosaic.version = 11 : i64} {
  func.func @bn_relu_kernel(%arg0: i32, %arg1: memref<256x128xf32, #tpu.memory_space<vmem>>, %arg2: memref<2x2x128xf32, #tpu.memory_space<vmem>>, %arg3: memref<1x128xf32, #tpu.memory_space<vmem>>, %arg4: memref<1x128xf32, #tpu.memory_space<vmem>>, %arg5: memref<256x128xf32, #tpu.memory_space<vmem>>) attributes {dimension_semantics = [#tpu.dimension_semantics<parallel>], iteration_bounds = array<i64: 2>, scalar_prefetch = 0 : i64, scratch_operands = 0 : i64, tpu.core_type = #tpu.core_type<tc>, window_params = [{transform_indices = @transform_0, window_bounds = array<i64: 256, 128>}, {pipeline_mode = #tpu.pipeline_mode<synchronous>, transform_indices = @transform_1, window_bounds = array<i64: 2, 2, 128>}, {pipeline_mode = #tpu.pipeline_mode<synchronous>, transform_indices = @transform_2, window_bounds = array<i64: 1, 128>}, {pipeline_mode = #tpu.pipeline_mode<synchronous>, transform_indices = @transform_3, window_bounds = array<i64: 1, 128>}, {transform_indices = @transform_4, window_bounds = array<i64: 256, 128>}]} {
    %c0 = arith.constant 0 : index
    %c0_0 = arith.constant 0 : index
    %c0_1 = arith.constant 0 : index
    %0 = vector.load %arg2[%c0, %c0_0, %c0_1] : memref<2x2x128xf32, #tpu.memory_space<vmem>>, vector<2x2x128xf32>
    %cst = arith.constant dense<0.000000e+00> : vector<2x128xf32>
    %1 = vector.multi_reduction <add>, %0, %cst [0] : vector<2x2x128xf32> to vector<2x128xf32>
    %2 = vector.extract_strided_slice %1 {offsets = [0, 0], sizes = [1, 128], strides = [1, 1]} : vector<2x128xf32> to vector<1x128xf32>
    %cst_2 = arith.constant 0.00255102036 : f32
    %3 = vector.broadcast %cst_2 : f32 to vector<1x128xf32>
    %4 = arith.mulf %2, %3 : vector<1x128xf32>
    %5 = vector.extract_strided_slice %1 {offsets = [1, 0], sizes = [1, 128], strides = [1, 1]} : vector<2x128xf32> to vector<1x128xf32>
    %cst_3 = arith.constant 0.00255102036 : f32
    %6 = vector.broadcast %cst_3 : f32 to vector<1x128xf32>
    %7 = arith.mulf %5, %6 : vector<1x128xf32>
    %8 = arith.mulf %4, %4 : vector<1x128xf32>
    %9 = arith.subf %7, %8 : vector<1x128xf32>
    %cst_4 = arith.constant 9.99999974E-6 : f32
    %10 = vector.broadcast %cst_4 : f32 to vector<1x128xf32>
    %11 = arith.addf %9, %10 : vector<1x128xf32>
    %12 = math.rsqrt %11 : vector<1x128xf32>
    %c0_5 = arith.constant 0 : index
    %c0_6 = arith.constant 0 : index
    %13 = vector.load %arg3[%c0_5, %c0_6] : memref<1x128xf32, #tpu.memory_space<vmem>>, vector<1x128xf32>
    %14 = arith.mulf %13, %12 : vector<1x128xf32>
    %c0_7 = arith.constant 0 : index
    %c0_8 = arith.constant 0 : index
    %15 = vector.load %arg4[%c0_7, %c0_8] : memref<1x128xf32, #tpu.memory_space<vmem>>, vector<1x128xf32>
    %16 = arith.mulf %4, %14 : vector<1x128xf32>
    %17 = arith.subf %15, %16 : vector<1x128xf32>
    %c0_9 = arith.constant 0 : index
    %c0_10 = arith.constant 0 : index
    %18 = vector.load %arg1[%c0_9, %c0_10] : memref<256x128xf32, #tpu.memory_space<vmem>>, vector<256x128xf32>
    %19 = vector.broadcast %14 : vector<1x128xf32> to vector<256x128xf32>
    %20 = arith.mulf %18, %19 : vector<256x128xf32>
    %21 = vector.broadcast %17 : vector<1x128xf32> to vector<256x128xf32>
    %22 = arith.addf %20, %21 : vector<256x128xf32>
    %cst_11 = arith.constant 0.000000e+00 : f32
    %23 = vector.broadcast %cst_11 : f32 to vector<256x128xf32>
    %24 = arith.maximumf %22, %23 : vector<256x128xf32>
    %c0_12 = arith.constant 0 : index
    %c0_13 = arith.constant 0 : index
    %25 = vector.load %arg5[%c0_12, %c0_13] : memref<256x128xf32, #tpu.memory_space<vmem>>, vector<256x128xf32>
    tpu.vector_store %arg5[%c0_12, %c0_13], %24 {strides = array<i32>} : memref<256x128xf32, #tpu.memory_space<vmem>>, vector<256x128xf32>,
    return
  }
  func.func @transform_0(%arg0: i32) -> (i32, i32) {
    %c0_i32 = arith.constant 0 : i32
    %c0_i32_0 = arith.constant 0 : i32
    return %arg0, %c0_i32 : i32, i32
  }
  func.func @transform_1(%arg0: i32) -> (i32, i32, i32) {
    %c0_i32 = arith.constant 0 : i32
    %c0_i32_0 = arith.constant 0 : i32
    %c0_i32_1 = arith.constant 0 : i32
    %c0_i32_2 = arith.constant 0 : i32
    return %c0_i32, %c0_i32_0, %c0_i32_1 : i32, i32, i32
  }
  func.func @transform_2(%arg0: i32) -> (i32, i32) {
    %c0_i32 = arith.constant 0 : i32
    %c0_i32_0 = arith.constant 0 : i32
    %c0_i32_1 = arith.constant 0 : i32
    return %c0_i32, %c0_i32_0 : i32, i32
  }
  func.func @transform_3(%arg0: i32) -> (i32, i32) {
    %c0_i32 = arith.constant 0 : i32
    %c0_i32_0 = arith.constant 0 : i32
    %c0_i32_1 = arith.constant 0 : i32
    return %c0_i32, %c0_i32_0 : i32, i32
  }
  func.func @transform_4(%arg0: i32) -> (i32, i32) {
    %c0_i32 = arith.constant 0 : i32
    %c0_i32_0 = arith.constant 0 : i32
    return %arg0, %c0_i32 : i32, i32
  }
}

</mosaic_0001>

<llo_original>
// kernel: conv_bn_relu.3
$region0: #{conv_bn_relu.3}
  #allocation0 [shape = 'u32[]', space=smem, size = 0x4, offset = 0x4, fixed_abs, tag = 'smem constant byte address 0x4 - core index']
  #allocation1 [shape = 'u32[144,128]{1,0:T(1,128)}', space=vmem, size = 0x12000, scoped, tag = 'internal scratch']
  %s0 = inlined_call_operand.vmem [shape: f32[448,128], index: 0, kind: input, shape index: {}]
  %s1 = inlined_call_operand.vmem [shape: f32[2,2,128], index: 1, kind: input, shape index: {}]
  %s2 = inlined_call_operand.vmem [shape: f32[1,128], index: 2, kind: input, shape index: {}]
  %s3 = inlined_call_operand.vmem [shape: f32[1,128], index: 3, kind: input, shape index: {}]
  %s4 = inlined_call_operand.vmem [shape: f32[448,128], index: 4, kind: output, shape index: {}]
  %s5 = sld [smem:[#allocation0]]
  $region97: #{conv_bn_relu.3} parent=0
    _
  %s7 = ssub.s32 1, %s5
  %s8 = scalar_select 0, %s7, %s5
  $region1: #{conv_bn_relu.3} parent=0
    #allocation2 [shape = 'u8[262144]{0}', space=vmem, size = 0x40000, scoped, tag = 'output window, operand 0']
    loop: start=0, step=1, limit=4
    $region2: #{conv_bn_relu.3} parent=1 // loop_pre_header
      _
    $region3: #{conv_bn_relu.3} parent=1 // loop_header
      %s10 = sphi 0, %s14
      %p11 = scmp.ge.s32.totalorder %s10, 4
      %s20 = sphi 0, %s22
      %s23 = sphi 0, %s20
      %s24 = sphi 0, %s23
      %s40 = sphi 0, %s24
      %s44 = sphi 0, %s44
      %s46 = sphi 0, %s44
      %s47 = sphi 0, %s46
      %s61 = sphi 0, %s47
      %s65 = sphi 0, %s65
      %s67 = sphi 0, %s65
      %s68 = sphi 0, %s67
      %s82 = sphi 0, %s68
      %s86 = sphi 0, %s86
      %s88 = sphi 0, %s86
      %s89 = sphi 0, %s88
      %s103 = sphi 0, %s89
      %s109 = sphi 0, %s111
      %s112 = sphi 0, %s109
      %s113 = sphi 0, %s112
      %s129 = sphi 0, %s113
    $region4: #{conv_bn_relu.3} parent=1 // loop_header_branch
      %13 = sbr.rel (%p11) target = $region8
    $region5: #{conv_bn_relu.3} parent=1 // loop_body
      %s15 = ssub.s32 %s10, 1
      %s16 = ssub.s32 %s10, 2
      %s17 = sadd.s32 %s10, 1
      %s18 = ssub.s32 %s10, %s17
      %p19 = scmp.eq.s32.totalorder %s18, 0
      %s21 = sadd.s32 %s20, 1
      %s22 = scalar_select %p19, %s20, %s21
      %p25 = pneg %p19
      %p26 = scmp.eq.s32.totalorder %s10, 1
      %p27 = por %p25, %p26
      %p28 = scmp.ne.s32.totalorder %s20, %s23
      %p29 = scmp.eq.s32.totalorder %s10, 0
      %p30 = por %p28, %p29
      %p31 = scmp.ne.s32.totalorder %s20, %s23
      %p32 = scmp.eq.s32.totalorder %s15, 1
      %p33 = por %p31, %p32
      %p34 = scmp.ne.s32.totalorder %s23, %s24
      %p35 = scmp.eq.s32.totalorder %s15, 0
      %p36 = por %p34, %p35
      %p37 = scmp.ne.s32.totalorder %s23, %s24
      %p38 = scmp.eq.s32.totalorder %s16, 1
      %p39 = por %p37, %p38
      %p41 = scmp.ne.s32.totalorder %s24, %s40
      %p42 = scmp.eq.s32.totalorder %s16, 0
      %p43 = por %p41, %p42
      %s45 = sadd.s32 %s44, 1
      %p48 = scmp.eq.s32.totalorder %s10, 1
      %p49 = scmp.ne.s32.totalorder %s44, %s46
      %p50 = scmp.eq.s32.totalorder %s10, 0
      %p51 = por %p49, %p50
      %p52 = scmp.ne.s32.totalorder %s44, %s46
      %p53 = scmp.eq.s32.totalorder %s15, 1
      %p54 = por %p52, %p53
      %p55 = scmp.ne.s32.totalorder %s46, %s47
      %p56 = scmp.eq.s32.totalorder %s15, 0
      %p57 = por %p55, %p56
      %p58 = scmp.ne.s32.totalorder %s46, %s47
      %p59 = scmp.eq.s32.totalorder %s16, 1
      %p60 = por %p58, %p59
      %p62 = scmp.ne.s32.totalorder %s47, %s61
      %p63 = scmp.eq.s32.totalorder %s16, 0
      %p64 = por %p62, %p63
      %s66 = sadd.s32 %s65, 1
      %p69 = scmp.eq.s32.totalorder %s10, 1
      %p70 = scmp.ne.s32.totalorder %s65, %s67
      %p71 = scmp.eq.s32.totalorder %s10, 0
      %p72 = por %p70, %p71
      %p73 = scmp.ne.s32.totalorder %s65, %s67
      %p74 = scmp.eq.s32.totalorder %s15, 1
      %p75 = por %p73, %p74
      %p76 = scmp.ne.s32.totalorder %s67, %s68
      %p77 = scmp.eq.s32.totalorder %s15, 0
      %p78 = por %p76, %p77
      %p79 = scmp.ne.s32.totalorder %s67, %s68
      %p80 = scmp.eq.s32.totalorder %s16, 1
      %p81 = por %p79, %p80
      %p83 = scmp.ne.s32.totalorder %s68, %s82
      %p84 = scmp.eq.s32.totalorder %s16, 0
      %p85 = por %p83, %p84
      %s87 = sadd.s32 %s86, 1
      %p90 = scmp.eq.s32.totalorder %s10, 1
      %p91 = scmp.ne.s32.totalorder %s86, %s88
      %p92 = scmp.eq.s32.totalorder %s10, 0
      %p93 = por %p91, %p92
      %p94 = scmp.ne.s32.totalorder %s86, %s88
      %p95 = scmp.eq.s32.totalorder %s15, 1
      %p96 = por %p94, %p95
      %p97 = scmp.ne.s32.totalorder %s88, %s89
      %p98 = scmp.eq.s32.totalorder %s15, 0
      %p99 = por %p97, %p98
      %p100 = scmp.ne.s32.totalorder %s88, %s89
      %p101 = scmp.eq.s32.totalorder %s16, 1
      %p102 = por %p100, %p101
      %p104 = scmp.ne.s32.totalorder %s89, %s103
      %p105 = scmp.eq.s32.totalorder %s16, 0
      %p106 = por %p104, %p105
      %s107 = ssub.s32 %s10, %s17
      %p108 = scmp.eq.s32.totalorder %s107, 0
      %s110 = sadd.s32 %s109, 1
      %s111 = scalar_select %p108, %s109, %s110
      %p114 = pneg %p108
      %p115 = scmp.eq.s32.totalorder %s10, 1
      %p116 = por %p114, %p115
      %p117 = scmp.ne.s32.totalorder %s109, %s112
      %p118 = scmp.eq.s32.totalorder %s10, 0
      %p119 = por %p117, %p118
      %p120 = scmp.ne.s32.totalorder %s109, %s112
      %p121 = scmp.eq.s32.totalorder %s15, 1
      %p122 = por %p120, %p121
      %p123 = scmp.ne.s32.totalorder %s112, %s113
      %p124 = scmp.eq.s32.totalorder %s15, 0
      %p125 = por %p123, %p124
      %p126 = scmp.ne.s32.totalorder %s112, %s113
      %p127 = scmp.eq.s32.totalorder %s16, 1
      %p128 = por %p126, %p127
      %p130 = scmp.ne.s32.totalorder %s113, %s129
      %p131 = scmp.eq.s32.totalorder %s16, 0
      %p132 = por %p130, %p131
      %p133 = scmp.le.s32.totalorder 1, %s10
      %p134 = scmp.lt.s32.totalorder %s10, 3
      %p135 = pnand %p133, %p134
      %p136 = pneg %p135
      // Predicated region
      $region9: #{conv_bn_relu.3} parent=5 // pred_check
        _
      $region10: #{conv_bn_relu.3} parent=5 // pred_check_branch
        %138 = sbr.rel (%p135) target = $region12
      $region11: #{conv_bn_relu.3} parent=5 // pred_region
        %s139 = ssub.s32 %s10, 1
        // Predicated region
        $region13: #{conv_bn_relu.3} parent=11 // pred_check
          %p140 = pneg %p57
        $region14: #{conv_bn_relu.3} parent=11 // pred_check_branch
          %142 = sbr.rel (%p140) target = $region16
        $region15: #{conv_bn_relu.3} parent=11 // pred_region
          _
        $region16: #{conv_bn_relu.3} parent=11 // pred_fallthru
          _
        // Predicated region
        $region17: #{conv_bn_relu.3} parent=11 // pred_check
          %p143 = pneg %p78
        $region18: #{conv_bn_relu.3} parent=11 // pred_check_branch
          %145 = sbr.rel (%p143) target = $region20
        $region19: #{conv_bn_relu.3} parent=11 // pred_region
          _
        $region20: #{conv_bn_relu.3} parent=11 // pred_fallthru
          _
        // Predicated region
        $region21: #{conv_bn_relu.3} parent=11 // pred_check
          %p146 = pneg %p99
        $region22: #{conv_bn_relu.3} parent=11 // pred_check_branch
          %148 = sbr.rel (%p146) target = $region24
        $region23: #{conv_bn_relu.3} parent=11 // pred_region
          _
        $region24: #{conv_bn_relu.3} parent=11 // pred_fallthru
          _
      $region12: #{conv_bn_relu.3} parent=5 // pred_fallthru
        _
      %p149 = scmp.lt.s32.totalorder %s10, 2
      // Predicated region
      $region25: #{conv_bn_relu.3} parent=5 // pred_check
        %p150 = pneg %p149
      $region26: #{conv_bn_relu.3} parent=5 // pred_check_branch
        %152 = sbr.rel (%p150) target = $region28
      $region27: #{conv_bn_relu.3} parent=5 // pred_region
        // Predicated region
        $region29: #{conv_bn_relu.3} parent=27 // pred_check
          %p153 = pneg %p30
        $region30: #{conv_bn_relu.3} parent=27 // pred_check_branch
          %155 = sbr.rel (%p153) target = $region32
        $region31: #{conv_bn_relu.3} parent=27 // pred_region
          %s156 = smul.u32 32, %s10
          %s157 = ssub.s32 56, %s156
          %p158 = scmp.lt.s32.totalorder %s157, 32
          %s159 = scalar_select %p158, %s157, 32
          %s160 = smul.u32 128, %s159
          %p161 = scmp.lt.s32.totalorder %s156, 55
          %s162 = scalar_select %p161, %s156, 55
          %s163 = smul.addr %s162, 8
          %s164 = scalar_lea.vmem %s0, %s163
          %s165 = smul.u32 32, %s10
          %s166 = ssub.s32 56, %s165
          %p167 = scmp.lt.s32.totalorder %s166, 32
          %s168 = scalar_select %p167, %s166, 32
          %s169 = smul.u32 128, %s168
        $region32: #{conv_bn_relu.3} parent=27 // pred_fallthru
          _
      $region28: #{conv_bn_relu.3} parent=5 // pred_fallthru
        _
      %p170 = scmp.le.s32.totalorder 1, %s10
      %p171 = scmp.lt.s32.totalorder %s10, 3
      %p172 = pnand %p170, %p171
      %p173 = pneg %p172
      // Predicated region
      $region33: #{conv_bn_relu.3} parent=5 // pred_check
        _
      $region34: #{conv_bn_relu.3} parent=5 // pred_check_branch
        %175 = sbr.rel (%p172) target = $region36
      $region35: #{conv_bn_relu.3} parent=5 // pred_region
        %s176 = ssub.s32 %s10, 1
        %s177 = smul.u32 32, %s15
        %s178 = ssub.s32 56, %s177
        %p179 = scmp.lt.s32.totalorder %s178, 32
        %s180 = scalar_select %p179, %s178, 32
        %s181 = smul.u32 128, %s180
        %p182 = scmp.lt.s32.totalorder %s177, 55
        %s183 = scalar_select %p182, %s177, 55
        %s184 = smul.addr %s183, 8
        %s185 = scalar_lea.vmem %s0, %s184
        %p186 = pneg %p36
        %p187 = pneg %p33
        %p188 = pneg %p57
        %p189 = pneg %p54
        %p190 = pneg %p78
        %p191 = pneg %p75
        %p192 = pneg %p99
        %p193 = pneg %p96
        %p194 = pneg %p125
        %p195 = pneg %p122
        %s196 = sand.u32 %s112, 1
        %s197 = sand.u32 %s112, 1
        %s198 = smul.addr %s197, 256
        %s199 = scalar_lea.vmem [#allocation2], %s198
        %s200 = smul.u32 32, %s15
        %s201 = ssub.s32 56, %s200
        %p202 = scmp.lt.s32.totalorder %s201, 32
        %s203 = scalar_select %p202, %s201, 32
        %s204 = smul.u32 128, %s203
        %p205 = scmp.lt.s32.totalorder %s200, 55
        %s206 = scalar_select %p205, %s200, 55
        %s207 = smul.addr %s206, 8
        %s208 = scalar_lea.vmem %s0, %s207
        %s209 = smul.u32 32, %s15
        %s210 = ssub.s32 56, %s209
        %p211 = scmp.lt.s32.totalorder %s210, 32
        %s212 = scalar_select %p211, %s210, 32
        %s213 = smul.u32 128, %s212
        %s214 = smul.u32 32, %s15
        %s215 = ssub.s32 56, %s214
        %p216 = scmp.lt.s32.totalorder %s215, 32
        %s217 = scalar_select %p216, %s215, 32
        %s218 = smul.u32 128, %s217
        %v219 = vld [vmem:[%s1] sm:$0x3]
        %v220 = vld [vmem:[%s1 + $0x2] sm:$0x3]
        %vm221 = vcmask 1041408
        %v222 = vsel %vm221, %v219, 0.0
        %v223 = vsel %vm221, %v220, 0.0
        %v224 = vadd.f32 %v222, %v223
        %v225 = vmul.f32 %v224, 0.0025510204
        %v226 = vmul.f32 %v225, %v225
        %v228 = vrot.slane %v226, 7
        %v230 = vsub.f32 %v225, %v228
        %v231 = vadd.f32 %v230, 1e-05
        %v232 = vrsqrt.pop %v231
        %v233 = vld [vmem:[%s2] sm:$0x1]
        %v236 = vunpack.c.l.s4 1966171168
        %v237 = vunpack.c.0.s8 %v236
        %v238 = vlaneseq
        %v239 = vshrl.u32 %v238, 7
        %v240 = vsub.s32 %v237, %v239
        %v241 = vrot.slane %v232, %v240
        %v242 = vcombine.high %v241, %v241
        %v244 = vunpack.c.l.s4 1966171168
        %v245 = vunpack.c.0.s8 %v244
        %v246 = vlaneseq
        %v247 = vshrl.u32 %v246, 7
        %v248 = vsub.s32 %v245, %v247
        %v249 = vrot.slane %v242, %v248
        %v251 = vmul.f32 %v233, %v249
        %v252 = vld [vmem:[%s3] sm:$0x1]
        %v253 = vmul.f32 %v225, %v251
        %v254 = vsub.f32 %v252, %v253
        %v255 = vld [vmem:[%s208] sm:$0xff]
        %v256 = vld [vmem:[%s208 + $0x8] sm:$0xff]
        %v257 = vld [vmem:[%s208 + $0x10] sm:$0xff]
        %v258 = vld [vmem:[%s208 + $0x18] sm:$0xff]
        %v259 = vld [vmem:[%s208 + $0x20] sm:$0xff]
        %v260 = vld [vmem:[%s208 + $0x28] sm:$0xff]
        %v261 = vld [vmem:[%s208 + $0x30] sm:$0xff]
        %v262 = vld [vmem:[%s208 + $0x38] sm:$0xff]
        %v263 = vld [vmem:[%s208 + $0x40] sm:$0xff]
        %v264 = vld [vmem:[%s208 + $0x48] sm:$0xff]
        %v265 = vld [vmem:[%s208 + $0x50] sm:$0xff]
        %v266 = vld [vmem:[%s208 + $0x58] sm:$0xff]
        %v267 = vld [vmem:[%s208 + $0x60] sm:$0xff]
        %v268 = vld [vmem:[%s208 + $0x68] sm:$0xff]
        %v269 = vld [vmem:[%s208 + $0x70] sm:$0xff]
        %v270 = vld [vmem:[%s208 + $0x78] sm:$0xff]
        %v271 = vld [vmem:[%s208 + $0x80] sm:$0xff]
        %v272 = vld [vmem:[%s208 + $0x88] sm:$0xff]
        %v273 = vld [vmem:[%s208 + $0x90] sm:$0xff]
        %v274 = vld [vmem:[%s208 + $0x98] sm:$0xff]
        %v275 = vld [vmem:[%s208 + $0xa0] sm:$0xff]
        %v276 = vld [vmem:[%s208 + $0xa8] sm:$0xff]
        %v277 = vld [vmem:[%s208 + $0xb0] sm:$0xff]
        %v278 = vld [vmem:[%s208 + $0xb8] sm:$0xff]
        %v279 = vld [vmem:[%s208 + $0xc0] sm:$0xff]
        %v280 = vld [vmem:[%s208 + $0xc8] sm:$0xff]
        %v281 = vld [vmem:[%s208 + $0xd0] sm:$0xff]
        %v282 = vld [vmem:[%s208 + $0xd8] sm:$0xff]
        %v283 = vld [vmem:[%s208 + $0xe0] sm:$0xff]
        %v284 = vld [vmem:[%s208 + $0xe8] sm:$0xff]
        %v285 = vld [vmem:[%s208 + $0xf0] sm:$0xff]
        %v286 = vld [vmem:[%s208 + $0xf8] sm:$0xff]
        %v288 = vlaneseq
        %v289 = vshrl.u32 %v288, 7
        %v290 = vsub.s32 0, %v289
        %v291 = vrot.slane %v251, %v290
        %v293 = vmul.f32 %v255, %v291
        %v294 = vmul.f32 %v256, %v291
        %v295 = vmul.f32 %v257, %v291
        %v296 = vmul.f32 %v258, %v291
        %v297 = vmul.f32 %v259, %v291
        %v298 = vmul.f32 %v260, %v291
        %v299 = vmul.f32 %v261, %v291
        %v300 = vmul.f32 %v262, %v291
        %v301 = vmul.f32 %v263, %v291
        %v302 = vmul.f32 %v264, %v291
        %v303 = vmul.f32 %v265, %v291
        %v304 = vmul.f32 %v266, %v291
        %v305 = vmul.f32 %v267, %v291
        %v306 = vmul.f32 %v268, %v291
        %v307 = vmul.f32 %v269, %v291
        %v308 = vmul.f32 %v270, %v291
        %v309 = vmul.f32 %v271, %v291
        %v310 = vmul.f32 %v272, %v291
        %v311 = vmul.f32 %v273, %v291
        %v312 = vmul.f32 %v274, %v291
        %v313 = vmul.f32 %v275, %v291
        %v314 = vmul.f32 %v276, %v291
        %v315 = vmul.f32 %v277, %v291
        %v316 = vmul.f32 %v278, %v291
        %v317 = vmul.f32 %v279, %v291
        %v318 = vmul.f32 %v280, %v291
        %v319 = vmul.f32 %v281, %v291
        %v320 = vmul.f32 %v282, %v291
        %v321 = vmul.f32 %v283, %v291
        %v322 = vmul.f32 %v284, %v291
        %v323 = vmul.f32 %v285, %v291
        %v324 = vmul.f32 %v286, %v291
        %v326 = vlaneseq
        %v327 = vshrl.u32 %v326, 7
        %v328 = vsub.s32 0, %v327
        %v329 = vrot.slane %v254, %v328
        %v331 = vadd.f32 %v293, %v329
        %v332 = vadd.f32 %v294, %v329
        %v333 = vadd.f32 %v295, %v329
        %v334 = vadd.f32 %v296, %v329
        %v335 = vadd.f32 %v297, %v329
        %v336 = vadd.f32 %v298, %v329
        %v337 = vadd.f32 %v299, %v329
        %v338 = vadd.f32 %v300, %v329
        %v339 = vadd.f32 %v301, %v329
        %v340 = vadd.f32 %v302, %v329
        %v341 = vadd.f32 %v303, %v329
        %v342 = vadd.f32 %v304, %v329
        %v343 = vadd.f32 %v305, %v329
        %v344 = vadd.f32 %v306, %v329
        %v345 = vadd.f32 %v307, %v329
        %v346 = vadd.f32 %v308, %v329
        %v347 = vadd.f32 %v309, %v329
        %v348 = vadd.f32 %v310, %v329
        %v349 = vadd.f32 %v311, %v329
        %v350 = vadd.f32 %v312, %v329
        %v351 = vadd.f32 %v313, %v329
        %v352 = vadd.f32 %v314, %v329
        %v353 = vadd.f32 %v315, %v329
        %v354 = vadd.f32 %v316, %v329
        %v355 = vadd.f32 %v317, %v329
        %v356 = vadd.f32 %v318, %v329
        %v357 = vadd.f32 %v319, %v329
        %v358 = vadd.f32 %v320, %v329
        %v359 = vadd.f32 %v321, %v329
        %v360 = vadd.f32 %v322, %v329
        %v361 = vadd.f32 %v323, %v329
        %v362 = vadd.f32 %v324, %v329
        %v363 = vmax.f32 %v331, 0.0
        %v364 = vmax.f32 %v332, 0.0
        %v365 = vmax.f32 %v333, 0.0
        %v366 = vmax.f32 %v334, 0.0
        %v367 = vmax.f32 %v335, 0.0
        %v368 = vmax.f32 %v336, 0.0
        %v369 = vmax.f32 %v337, 0.0
        %v370 = vmax.f32 %v338, 0.0
        %v371 = vmax.f32 %v339, 0.0
        %v372 = vmax.f32 %v340, 0.0
        %v373 = vmax.f32 %v341, 0.0
        %v374 = vmax.f32 %v342, 0.0
        %v375 = vmax.f32 %v343, 0.0
        %v376 = vmax.f32 %v344, 0.0
        %v377 = vmax.f32 %v345, 0.0
        %v378 = vmax.f32 %v346, 0.0
        %v379 = vmax.f32 %v347, 0.0
        %v380 = vmax.f32 %v348, 0.0
        %v381 = vmax.f32 %v349, 0.0
        %v382 = vmax.f32 %v350, 0.0
        %v383 = vmax.f32 %v351, 0.0
        %v384 = vmax.f32 %v352, 0.0
        %v385 = vmax.f32 %v353, 0.0
        %v386 = vmax.f32 %v354, 0.0
        %v387 = vmax.f32 %v355, 0.0
        %v388 = vmax.f32 %v356, 0.0
        %v389 = vmax.f32 %v357, 0.0
        %v390 = vmax.f32 %v358, 0.0
        %v391 = vmax.f32 %v359, 0.0
        %v392 = vmax.f32 %v360, 0.0
        %v393 = vmax.f32 %v361, 0.0
        %v394 = vmax.f32 %v362, 0.0
        %395 = vst [vmem:[%s199] sm:$0xff] %v363
        %396 = vst [vmem:[%s199 + $0x8] sm:$0xff] %v364
        %397 = vst [vmem:[%s199 + $0x10] sm:$0xff] %v365
        %398 = vst [vmem:[%s199 + $0x18] sm:$0xff] %v366
        %399 = vst [vmem:[%s199 + $0x20] sm:$0xff] %v367
        %400 = vst [vmem:[%s199 + $0x28] sm:$0xff] %v368
        %401 = vst [vmem:[%s199 + $0x30] sm:$0xff] %v369
        %402 = vst [vmem:[%s199 + $0x38] sm:$0xff] %v370
        %403 = vst [vmem:[%s199 + $0x40] sm:$0xff] %v371
        %404 = vst [vmem:[%s199 + $0x48] sm:$0xff] %v372
        %405 = vst [vmem:[%s199 + $0x50] sm:$0xff] %v373
        %406 = vst [vmem:[%s199 + $0x58] sm:$0xff] %v374
        %407 = vst [vmem:[%s199 + $0x60] sm:$0xff] %v375
        %408 = vst [vmem:[%s199 + $0x68] sm:$0xff] %v376
        %409 = vst [vmem:[%s199 + $0x70] sm:$0xff] %v377
        %410 = vst [vmem:[%s199 + $0x78] sm:$0xff] %v378
        %411 = vst [vmem:[%s199 + $0x80] sm:$0xff] %v379
        %412 = vst [vmem:[%s199 + $0x88] sm:$0xff] %v380
        %413 = vst [vmem:[%s199 + $0x90] sm:$0xff] %v381
        %414 = vst [vmem:[%s199 + $0x98] sm:$0xff] %v382
        %415 = vst [vmem:[%s199 + $0xa0] sm:$0xff] %v383
        %416 = vst [vmem:[%s199 + $0xa8] sm:$0xff] %v384
        %417 = vst [vmem:[%s199 + $0xb0] sm:$0xff] %v385
        %418 = vst [vmem:[%s199 + $0xb8] sm:$0xff] %v386
        %419 = vst [vmem:[%s199 + $0xc0] sm:$0xff] %v387
        %420 = vst [vmem:[%s199 + $0xc8] sm:$0xff] %v388
        %421 = vst [vmem:[%s199 + $0xd0] sm:$0xff] %v389
        %422 = vst [vmem:[%s199 + $0xd8] sm:$0xff] %v390
        %423 = vst [vmem:[%s199 + $0xe0] sm:$0xff] %v391
        %424 = vst [vmem:[%s199 + $0xe8] sm:$0xff] %v392
        %425 = vst [vmem:[%s199 + $0xf0] sm:$0xff] %v393
        %426 = vst [vmem:[%s199 + $0xf8] sm:$0xff] %v394
        %s427 = sand.u32 %s112, 1
        %s428 = sand.u32 %s112, 1
        %s429 = smul.addr %s428, 256
        %s430 = scalar_lea.vmem [#allocation2], %s429
        // Predicated region
        $region37: #{conv_bn_relu.3} parent=35 // pred_check
          %p431 = pneg %p122
        $region38: #{conv_bn_relu.3} parent=35 // pred_check_branch
          %433 = sbr.rel (%p431) target = $region40
        $region39: #{conv_bn_relu.3} parent=35 // pred_region
          %s434 = smul.u32 32, %s15
          %s435 = ssub.s32 56, %s434
          %p436 = scmp.lt.s32.totalorder %s435, 32
          %s437 = scalar_select %p436, %s435, 32
          %s438 = smul.u32 128, %s437
          %p439 = scmp.ne.s32.totalorder 0, %s438
          %s440 = smul.addr %s434, 8
          %s441 = scalar_lea.vmem %s4, %s440
          // Predicated region
          $region41: #{conv_bn_relu.3} parent=39 // pred_check
            %p442 = pneg %p439
          $region42: #{conv_bn_relu.3} parent=39 // pred_check_branch
            %444 = sbr.rel (%p442) target = $region44
          $region43: #{conv_bn_relu.3} parent=39 // pred_region
            // Predicated region
            $region45: #{conv_bn_relu.3} parent=43 // pred_check
              _
            $region46: #{conv_bn_relu.3} parent=43 // pred_check_branch
              %446 = sbr.rel (0) target = $region48
            $region47: #{conv_bn_relu.3} parent=43 // pred_region
              // Predicated region
              $region67: #{conv_bn_relu.3} parent=47 // pred_check
                _
              $region68: #{conv_bn_relu.3} parent=47 // pred_check_branch
                %557 = sbr.rel (0) target = $region70
              $region69: #{conv_bn_relu.3} parent=47 // pred_region
                %s558 = sshrl.u32 %s437, 5
                // While loop
                $region71: #{conv_bn_relu.3} parent=69 // loop_pre_header
                  _
                $region72: #{conv_bn_relu.3} parent=69 // loop_header
                  %s560 = sphi 0, %s562
                  %p561 = scmp.ge.s32.totalorder %s560, %s558
                  %s565 = sphi 0, %s634
                  %s566 = sphi %s430, %s637
                  %s567 = sphi %s441, %s638
                $region73: #{conv_bn_relu.3} parent=69 // loop_header_branch
                  %564 = sbr.rel (%p561) target = $region77
                $region74: #{conv_bn_relu.3} parent=69 // loop_body
                  %v568 = vld [vmem:[%s566] sm:$0xff]
                  %569 = vst [vmem:[%s567] sm:$0xff] %v568
                  %v570 = vld [vmem:[%s566 + $0x8] sm:$0xff]
                  %571 = vst [vmem:[%s567 + $0x8] sm:$0xff] %v570
                  %v572 = vld [vmem:[%s566 + $0x10] sm:$0xff]
                  %573 = vst [vmem:[%s567 + $0x10] sm:$0xff] %v572
                  %v574 = vld [vmem:[%s566 + $0x18] sm:$0xff]
                  %575 = vst [vmem:[%s567 + $0x18] sm:$0xff] %v574
                  %v576 = vld [vmem:[%s566 + $0x20] sm:$0xff]
                  %577 = vst [vmem:[%s567 + $0x20] sm:$0xff] %v576
                  %v578 = vld [vmem:[%s566 + $0x28] sm:$0xff]
                  %579 = vst [vmem:[%s567 + $0x28] sm:$0xff] %v578
                  %v580 = vld [vmem:[%s566 + $0x30] sm:$0xff]
                  %581 = vst [vmem:[%s567 + $0x30] sm:$0xff] %v580
                  %v582 = vld [vmem:[%s566 + $0x38] sm:$0xff]
                  %583 = vst [vmem:[%s567 + $0x38] sm:$0xff] %v582
                  %v584 = vld [vmem:[%s566 + $0x40] sm:$0xff]
                  %585 = vst [vmem:[%s567 + $0x40] sm:$0xff] %v584
                  %v586 = vld [vmem:[%s566 + $0x48] sm:$0xff]
                  %587 = vst [vmem:[%s567 + $0x48] sm:$0xff] %v586
                  %v588 = vld [vmem:[%s566 + $0x50] sm:$0xff]
                  %589 = vst [vmem:[%s567 + $0x50] sm:$0xff] %v588
                  %v590 = vld [vmem:[%s566 + $0x58] sm:$0xff]
                  %591 = vst [vmem:[%s567 + $0x58] sm:$0xff] %v590
                  %v592 = vld [vmem:[%s566 + $0x60] sm:$0xff]
                  %593 = vst [vmem:[%s567 + $0x60] sm:$0xff] %v592
                  %v594 = vld [vmem:[%s566 + $0x68] sm:$0xff]
                  %595 = vst [vmem:[%s567 + $0x68] sm:$0xff] %v594
                  %v596 = vld [vmem:[%s566 + $0x70] sm:$0xff]
                  %597 = vst [vmem:[%s567 + $0x70] sm:$0xff] %v596
                  %v598 = vld [vmem:[%s566 + $0x78] sm:$0xff]
                  %599 = vst [vmem:[%s567 + $0x78] sm:$0xff] %v598
                  %v600 = vld [vmem:[%s566 + $0x80] sm:$0xff]
                  %601 = vst [vmem:[%s567 + $0x80] sm:$0xff] %v600
                  %v602 = vld [vmem:[%s566 + $0x88] sm:$0xff]
                  %603 = vst [vmem:[%s567 + $0x88] sm:$0xff] %v602
                  %v604 = vld [vmem:[%s566 + $0x90] sm:$0xff]
                  %605 = vst [vmem:[%s567 + $0x90] sm:$0xff] %v604
                  %v606 = vld [vmem:[%s566 + $0x98] sm:$0xff]
                  %607 = vst [vmem:[%s567 + $0x98] sm:$0xff] %v606
                  %v608 = vld [vmem:[%s566 + $0xa0] sm:$0xff]
                  %609 = vst [vmem:[%s567 + $0xa0] sm:$0xff] %v608
                  %v610 = vld [vmem:[%s566 + $0xa8] sm:$0xff]
                  %611 = vst [vmem:[%s567 + $0xa8] sm:$0xff] %v610
                  %v612 = vld [vmem:[%s566 + $0xb0] sm:$0xff]
                  %613 = vst [vmem:[%s567 + $0xb0] sm:$0xff] %v612
                  %v614 = vld [vmem:[%s566 + $0xb8] sm:$0xff]
                  %615 = vst [vmem:[%s567 + $0xb8] sm:$0xff] %v614
                  %v616 = vld [vmem:[%s566 + $0xc0] sm:$0xff]
                  %617 = vst [vmem:[%s567 + $0xc0] sm:$0xff] %v616
                  %v618 = vld [vmem:[%s566 + $0xc8] sm:$0xff]
                  %619 = vst [vmem:[%s567 + $0xc8] sm:$0xff] %v618
                  %v620 = vld [vmem:[%s566 + $0xd0] sm:$0xff]
                  %621 = vst [vmem:[%s567 + $0xd0] sm:$0xff] %v620
                  %v622 = vld [vmem:[%s566 + $0xd8] sm:$0xff]
                  %623 = vst [vmem:[%s567 + $0xd8] sm:$0xff] %v622
                  %v624 = vld [vmem:[%s566 + $0xe0] sm:$0xff]
                  %625 = vst [vmem:[%s567 + $0xe0] sm:$0xff] %v624
                  %v626 = vld [vmem:[%s566 + $0xe8] sm:$0xff]
                  %627 = vst [vmem:[%s567 + $0xe8] sm:$0xff] %v626
                  %v628 = vld [vmem:[%s566 + $0xf0] sm:$0xff]
                  %629 = vst [vmem:[%s567 + $0xf0] sm:$0xff] %v628
                  %v630 = vld [vmem:[%s566 + $0xf8] sm:$0xff]
                  %631 = vst [vmem:[%s567 + $0xf8] sm:$0xff] %v630
                  %s632 = sadd.s32 1, %s565
                  %p633 = scmp.ge.s32.totalorder %s632, %s558
                  %s634 = scalar_select %p633, 0, %s632
                  %s635 = smul.u32 %s634, 256
                  %s636 = smul.u32 %s634, 256
                  %s637 = scalar_lea.vmem %s430, %s635 [#allocation2]
                  %s638 = scalar_lea.vmem %s441, %s636
                $region75: #{conv_bn_relu.3} parent=69 // loop_footer
                  %s562 = sadd.s32 %s560, 1
                $region76: #{conv_bn_relu.3} parent=69 // loop_footer_branch
                  %559 = sbr.rel target = $region72
                $region77: #{conv_bn_relu.3} parent=69 // loop_exit
                  _
                %s639 = sshrl.u32 %s437, 5
                %s640 = sand.u32 %s437, 31
                %s641 = smul.u32 %s639, 32
                %s642 = smul.u32 8, %s641
                %s643 = scalar_lea.vmem %s430, %s642 [#allocation2]
                %s644 = smul.u32 8, %s641
                %s645 = scalar_lea.vmem %s441, %s644
                // While loop
                $region78: #{conv_bn_relu.3} parent=69 // loop_pre_header
                  _
                $region79: #{conv_bn_relu.3} parent=69 // loop_header
                  %s647 = sphi 0, %s649
                  %p648 = scmp.ge.s32.totalorder %s647, %s640
                  %s652 = sphi 0, %s659
                  %s653 = sphi %s643, %s662
                  %s654 = sphi %s645, %s663
                $region80: #{conv_bn_relu.3} parent=69 // loop_header_branch
                  %651 = sbr.rel (%p648) target = $region84
                $region81: #{conv_bn_relu.3} parent=69 // loop_body
                  %v655 = vld [vmem:[%s653] sm:$0xff]
                  %656 = vst [vmem:[%s654] sm:$0xff] %v655
                  %s657 = sadd.s32 1, %s652
                  %p658 = scmp.ge.s32.totalorder %s657, %s640
                  %s659 = scalar_select %p658, 0, %s657
                  %s660 = smul.u32 %s659, 8
                  %s661 = smul.u32 %s659, 8
                  %s662 = scalar_lea.vmem %s643, %s660 [#allocation2]
                  %s663 = scalar_lea.vmem %s645, %s661
                $region82: #{conv_bn_relu.3} parent=69 // loop_footer
                  %s649 = sadd.s32 %s647, 1
                $region83: #{conv_bn_relu.3} parent=69 // loop_footer_branch
                  %646 = sbr.rel target = $region79
                $region84: #{conv_bn_relu.3} parent=69 // loop_exit
                  _
              $region70: #{conv_bn_relu.3} parent=47 // pred_fallthru
                _
              // Predicated region
              $region85: #{conv_bn_relu.3} parent=47 // pred_check
                _
              $region86: #{conv_bn_relu.3} parent=47 // pred_check_branch
                %665 = sbr.rel target = $region88
              $region87: #{conv_bn_relu.3} parent=47 // pred_region
                _
              $region88: #{conv_bn_relu.3} parent=47 // pred_fallthru
                _
            $region48: #{conv_bn_relu.3} parent=43 // pred_fallthru
              _
            // Predicated region
            $region49: #{conv_bn_relu.3} parent=43 // pred_check
              _
            $region50: #{conv_bn_relu.3} parent=43 // pred_check_branch
              %448 = sbr.rel target = $region52
            $region51: #{conv_bn_relu.3} parent=43 // pred_region
              %s450 = sshrl.u32 %s437, 5
              // While loop
              $region53: #{conv_bn_relu.3} parent=51 // loop_pre_header
                _
              $region54: #{conv_bn_relu.3} parent=51 // loop_header
                %s452 = sphi 0, %s454
                %p453 = scmp.ge.s32.totalorder %s452, %s450
                %s457 = sphi 0, %s526
                %s458 = sphi %s430, %s529
                %s459 = sphi %s441, %s530
              $region55: #{conv_bn_relu.3} parent=51 // loop_header_branch
                %456 = sbr.rel (%p453) target = $region59
              $region56: #{conv_bn_relu.3} parent=51 // loop_body
                %v460 = vld [vmem:[%s458] sm:$0xff]
                %461 = vst [vmem:[%s459] sm:$0xff] %v460
                %v462 = vld [vmem:[%s458 + $0x8] sm:$0xff]
                %463 = vst [vmem:[%s459 + $0x8] sm:$0xff] %v462
                %v464 = vld [vmem:[%s458 + $0x10] sm:$0xff]
                %465 = vst [vmem:[%s459 + $0x10] sm:$0xff] %v464
                %v466 = vld [vmem:[%s458 + $0x18] sm:$0xff]
                %467 = vst [vmem:[%s459 + $0x18] sm:$0xff] %v466
                %v468 = vld [vmem:[%s458 + $0x20] sm:$0xff]
                %469 = vst [vmem:[%s459 + $0x20] sm:$0xff] %v468
                %v470 = vld [vmem:[%s458 + $0x28] sm:$0xff]
                %471 = vst [vmem:[%s459 + $0x28] sm:$0xff] %v470
                %v472 = vld [vmem:[%s458 + $0x30] sm:$0xff]
                %473 = vst [vmem:[%s459 + $0x30] sm:$0xff] %v472
                %v474 = vld [vmem:[%s458 + $0x38] sm:$0xff]
                %475 = vst [vmem:[%s459 + $0x38] sm:$0xff] %v474
                %v476 = vld [vmem:[%s458 + $0x40] sm:$0xff]
                %477 = vst [vmem:[%s459 + $0x40] sm:$0xff] %v476
                %v478 = vld [vmem:[%s458 + $0x48] sm:$0xff]
                %479 = vst [vmem:[%s459 + $0x48] sm:$0xff] %v478
                %v480 = vld [vmem:[%s458 + $0x50] sm:$0xff]
                %481 = vst [vmem:[%s459 + $0x50] sm:$0xff] %v480
                %v482 = vld [vmem:[%s458 + $0x58] sm:$0xff]
                %483 = vst [vmem:[%s459 + $0x58] sm:$0xff] %v482
                %v484 = vld [vmem:[%s458 + $0x60] sm:$0xff]
                %485 = vst [vmem:[%s459 + $0x60] sm:$0xff] %v484
                %v486 = vld [vmem:[%s458 + $0x68] sm:$0xff]
                %487 = vst [vmem:[%s459 + $0x68] sm:$0xff] %v486
                %v488 = vld [vmem:[%s458 + $0x70] sm:$0xff]
                %489 = vst [vmem:[%s459 + $0x70] sm:$0xff] %v488
                %v490 = vld [vmem:[%s458 + $0x78] sm:$0xff]
                %491 = vst [vmem:[%s459 + $0x78] sm:$0xff] %v490
                %v492 = vld [vmem:[%s458 + $0x80] sm:$0xff]
                %493 = vst [vmem:[%s459 + $0x80] sm:$0xff] %v492
                %v494 = vld [vmem:[%s458 + $0x88] sm:$0xff]
                %495 = vst [vmem:[%s459 + $0x88] sm:$0xff] %v494
                %v496 = vld [vmem:[%s458 + $0x90] sm:$0xff]
                %497 = vst [vmem:[%s459 + $0x90] sm:$0xff] %v496
                %v498 = vld [vmem:[%s458 + $0x98] sm:$0xff]
                %499 = vst [vmem:[%s459 + $0x98] sm:$0xff] %v498
                %v500 = vld [vmem:[%s458 + $0xa0] sm:$0xff]
                %501 = vst [vmem:[%s459 + $0xa0] sm:$0xff] %v500
                %v502 = vld [vmem:[%s458 + $0xa8] sm:$0xff]
                %503 = vst [vmem:[%s459 + $0xa8] sm:$0xff] %v502
                %v504 = vld [vmem:[%s458 + $0xb0] sm:$0xff]
                %505 = vst [vmem:[%s459 + $0xb0] sm:$0xff] %v504
                %v506 = vld [vmem:[%s458 + $0xb8] sm:$0xff]
                %507 = vst [vmem:[%s459 + $0xb8] sm:$0xff] %v506
                %v508 = vld [vmem:[%s458 + $0xc0] sm:$0xff]
                %509 = vst [vmem:[%s459 + $0xc0] sm:$0xff] %v508
                %v510 = vld [vmem:[%s458 + $0xc8] sm:$0xff]
                %511 = vst [vmem:[%s459 + $0xc8] sm:$0xff] %v510
                %v512 = vld [vmem:[%s458 + $0xd0] sm:$0xff]
                %513 = vst [vmem:[%s459 + $0xd0] sm:$0xff] %v512
                %v514 = vld [vmem:[%s458 + $0xd8] sm:$0xff]
                %515 = vst [vmem:[%s459 + $0xd8] sm:$0xff] %v514
                %v516 = vld [vmem:[%s458 + $0xe0] sm:$0xff]
                %517 = vst [vmem:[%s459 + $0xe0] sm:$0xff] %v516
                %v518 = vld [vmem:[%s458 + $0xe8] sm:$0xff]
                %519 = vst [vmem:[%s459 + $0xe8] sm:$0xff] %v518
                %v520 = vld [vmem:[%s458 + $0xf0] sm:$0xff]
                %521 = vst [vmem:[%s459 + $0xf0] sm:$0xff] %v520
                %v522 = vld [vmem:[%s458 + $0xf8] sm:$0xff]
                %523 = vst [vmem:[%s459 + $0xf8] sm:$0xff] %v522
                %s524 = sadd.s32 1, %s457
                %p525 = scmp.ge.s32.totalorder %s524, %s450
                %s526 = scalar_select %p525, 0, %s524
                %s527 = smul.u32 %s526, 256
                %s528 = smul.u32 %s526, 256
                %s529 = scalar_lea.vmem %s430, %s527 [#allocation2]
                %s530 = scalar_lea.vmem %s441, %s528
              $region57: #{conv_bn_relu.3} parent=51 // loop_footer
                %s454 = sadd.s32 %s452, 1
              $region58: #{conv_bn_relu.3} parent=51 // loop_footer_branch
                %451 = sbr.rel target = $region54
              $region59: #{conv_bn_relu.3} parent=51 // loop_exit
                _
              %s531 = sshrl.u32 %s437, 5
              %s532 = sand.u32 %s437, 31
              %s533 = smul.u32 %s531, 32
              %s534 = smul.u32 8, %s533
              %s535 = scalar_lea.vmem %s430, %s534 [#allocation2]
              %s536 = smul.u32 8, %s533
              %s537 = scalar_lea.vmem %s441, %s536
              // While loop
              $region60: #{conv_bn_relu.3} parent=51 // loop_pre_header
                _
              $region61: #{conv_bn_relu.3} parent=51 // loop_header
                %s539 = sphi 0, %s541
                %p540 = scmp.ge.s32.totalorder %s539, %s532
                %s544 = sphi 0, %s551
                %s545 = sphi %s535, %s554
                %s546 = sphi %s537, %s555
              $region62: #{conv_bn_relu.3} parent=51 // loop_header_branch
                %543 = sbr.rel (%p540) target = $region66
              $region63: #{conv_bn_relu.3} parent=51 // loop_body
                %v547 = vld [vmem:[%s545] sm:$0xff]
                %548 = vst [vmem:[%s546] sm:$0xff] %v547
                %s549 = sadd.s32 1, %s544
                %p550 = scmp.ge.s32.totalorder %s549, %s532
                %s551 = scalar_select %p550, 0, %s549
                %s552 = smul.u32 %s551, 8
                %s553 = smul.u32 %s551, 8
                %s554 = scalar_lea.vmem %s535, %s552 [#allocation2]
                %s555 = scalar_lea.vmem %s537, %s553
              $region64: #{conv_bn_relu.3} parent=51 // loop_footer
                %s541 = sadd.s32 %s539, 1
              $region65: #{conv_bn_relu.3} parent=51 // loop_footer_branch
                %538 = sbr.rel target = $region61
              $region66: #{conv_bn_relu.3} parent=51 // loop_exit
                _
            $region52: #{conv_bn_relu.3} parent=43 // pred_fallthru
              _
          $region44: #{conv_bn_relu.3} parent=39 // pred_fallthru
            _
          %666 = vnop
        $region40: #{conv_bn_relu.3} parent=35 // pred_fallthru
          _
      $region36: #{conv_bn_relu.3} parent=5 // pred_fallthru
        _
      %p667 = scmp.le.s32.totalorder 2, %s10
      // Predicated region
      $region89: #{conv_bn_relu.3} parent=5 // pred_check
        %p668 = pneg %p667
      $region90: #{conv_bn_relu.3} parent=5 // pred_check_branch
        %670 = sbr.rel (%p668) target = $region92
      $region91: #{conv_bn_relu.3} parent=5 // pred_region
        %s671 = ssub.s32 %s10, 2
        // Predicated region
        $region93: #{conv_bn_relu.3} parent=91 // pred_check
          %p672 = pneg %p128
        $region94: #{conv_bn_relu.3} parent=91 // pred_check_branch
          %674 = sbr.rel (%p672) target = $region96
        $region95: #{conv_bn_relu.3} parent=91 // pred_region
          %s675 = sand.u32 %s113, 1
          %s676 = sand.u32 %s113, 1
          %s677 = smul.addr %s676, 256
          %s678 = scalar_lea.vmem [#allocation2], %s677
        $region96: #{conv_bn_relu.3} parent=91 // pred_fallthru
          _
      $region92: #{conv_bn_relu.3} parent=5 // pred_fallthru
        _
    $region6: #{conv_bn_relu.3} parent=1 // loop_footer
      %s14 = sadd.s32 1, %s10
    $region7: #{conv_bn_relu.3} parent=1 // loop_footer_branch
      %9 = sbr.rel target = $region3
    $region8: #{conv_bn_relu.3} parent=1 // loop_exit
      _

// kernel: conv_bn_relu.2
$region0: #{conv_bn_relu.2}
  #allocation0 [shape = 'u32[]', space=smem, size = 0x4, offset = 0x4, fixed_abs, tag = 'smem constant byte address 0x4 - core index']
  #allocation1 [shape = 'u32[144,128]{1,0:T(1,128)}', space=vmem, size = 0x12000, scoped, tag = 'internal scratch']
  %s0 = inlined_call_operand.vmem [shape: f32[2,264,4], index: 0, kind: input, shape index: {}]
  %s1 = inlined_call_operand.vmem [shape: f32[36,128], index: 1, kind: input, shape index: {}]
  %s2 = inlined_call_operand.vmem [shape: f32[224,1], index: 2, kind: input, shape index: {}]
  %s3 = inlined_call_operand.vmem [shape: f32[2,224,128], index: 3, kind: output, shape index: {0}]
  %s4 = inlined_call_operand.vmem [shape: f32[2,2,128], index: 4, kind: output, shape index: {1}]
  %5 = xla_tuple %s3, %s4
  %s6 = sld [smem:[#allocation0]]
  $region53: #{conv_bn_relu.2} parent=0
    _
  %s8 = ssub.s32 1, %s6
  %s9 = scalar_select 0, %s8, %s6
  loop: start=0, step=1, limit=4
  $region2: #{conv_bn_relu.2} parent=0 // loop_pre_header
    _
  $region3: #{conv_bn_relu.2} parent=0 // loop_header
    %s11 = sphi 0, %s15
    %p12 = scmp.ge.s32.totalorder %s11, 4
    %s21 = sphi 0, %s23
    %s24 = sphi 0, %s21
    %s25 = sphi 0, %s24
    %s41 = sphi 0, %s25
    %s45 = sphi 0, %s45
    %s47 = sphi 0, %s45
    %s48 = sphi 0, %s47
    %s62 = sphi 0, %s48
    %s66 = sphi 0, %s66
    %s68 = sphi 0, %s66
    %s69 = sphi 0, %s68
    %s83 = sphi 0, %s69
    %s89 = sphi 0, %s91
    %s92 = sphi 0, %s89
    %s93 = sphi 0, %s92
    %s109 = sphi 0, %s93
    %s115 = sphi 0, %s117
    %s118 = sphi 0, %s115
    %s119 = sphi 0, %s118
    %s135 = sphi 0, %s119
  $region4: #{conv_bn_relu.2} parent=0 // loop_header_branch
    %14 = sbr.rel (%p12) target = $region8
  $region5: #{conv_bn_relu.2} parent=0 // loop_body
    %s16 = ssub.s32 %s11, 1
    %s17 = ssub.s32 %s11, 2
    %s18 = sadd.s32 %s11, 1
    %s19 = ssub.s32 %s11, %s18
    %p20 = scmp.eq.s32.totalorder %s19, 0
    %s22 = sadd.s32 %s21, 1
    %s23 = scalar_select %p20, %s21, %s22
    %p26 = pneg %p20
    %p27 = scmp.eq.s32.totalorder %s11, 1
    %p28 = por %p26, %p27
    %p29 = scmp.ne.s32.totalorder %s21, %s24
    %p30 = scmp.eq.s32.totalorder %s11, 0
    %p31 = por %p29, %p30
    %p32 = scmp.ne.s32.totalorder %s21, %s24
    %p33 = scmp.eq.s32.totalorder %s16, 1
    %p34 = por %p32, %p33
    %p35 = scmp.ne.s32.totalorder %s24, %s25
    %p36 = scmp.eq.s32.totalorder %s16, 0
    %p37 = por %p35, %p36
    %p38 = scmp.ne.s32.totalorder %s24, %s25
    %p39 = scmp.eq.s32.totalorder %s17, 1
    %p40 = por %p38, %p39
    %p42 = scmp.ne.s32.totalorder %s25, %s41
    %p43 = scmp.eq.s32.totalorder %s17, 0
    %p44 = por %p42, %p43
    %s46 = sadd.s32 %s45, 1
    %p49 = scmp.eq.s32.totalorder %s11, 1
    %p50 = scmp.ne.s32.totalorder %s45, %s47
    %p51 = scmp.eq.s32.totalorder %s11, 0
    %p52 = por %p50, %p51
    %p53 = scmp.ne.s32.totalorder %s45, %s47
    %p54 = scmp.eq.s32.totalorder %s16, 1
    %p55 = por %p53, %p54
    %p56 = scmp.ne.s32.totalorder %s47, %s48
    %p57 = scmp.eq.s32.totalorder %s16, 0
    %p58 = por %p56, %p57
    %p59 = scmp.ne.s32.totalorder %s47, %s48
    %p60 = scmp.eq.s32.totalorder %s17, 1
    %p61 = por %p59, %p60
    %p63 = scmp.ne.s32.totalorder %s48, %s62
    %p64 = scmp.eq.s32.totalorder %s17, 0
    %p65 = por %p63, %p64
    %s67 = sadd.s32 %s66, 1
    %p70 = scmp.eq.s32.totalorder %s11, 1
    %p71 = scmp.ne.s32.totalorder %s66, %s68
    %p72 = scmp.eq.s32.totalorder %s11, 0
    %p73 = por %p71, %p72
    %p74 = scmp.ne.s32.totalorder %s66, %s68
    %p75 = scmp.eq.s32.totalorder %s16, 1
    %p76 = por %p74, %p75
    %p77 = scmp.ne.s32.totalorder %s68, %s69
    %p78 = scmp.eq.s32.totalorder %s16, 0
    %p79 = por %p77, %p78
    %p80 = scmp.ne.s32.totalorder %s68, %s69
    %p81 = scmp.eq.s32.totalorder %s17, 1
    %p82 = por %p80, %p81
    %p84 = scmp.ne.s32.totalorder %s69, %s83
    %p85 = scmp.eq.s32.totalorder %s17, 0
    %p86 = por %p84, %p85
    %s87 = ssub.s32 %s11, %s18
    %p88 = scmp.eq.s32.totalorder %s87, 0
    %s90 = sadd.s32 %s89, 1
    %s91 = scalar_select %p88, %s89, %s90
    %p94 = pneg %p88
    %p95 = scmp.eq.s32.totalorder %s11, 1
    %p96 = por %p94, %p95
    %p97 = scmp.ne.s32.totalorder %s89, %s92
    %p98 = scmp.eq.s32.totalorder %s11, 0
    %p99 = por %p97, %p98
    %p100 = scmp.ne.s32.totalorder %s89, %s92
    %p101 = scmp.eq.s32.totalorder %s16, 1
    %p102 = por %p100, %p101
    %p103 = scmp.ne.s32.totalorder %s92, %s93
    %p104 = scmp.eq.s32.totalorder %s16, 0
    %p105 = por %p103, %p104
    %p106 = scmp.ne.s32.totalorder %s92, %s93
    %p107 = scmp.eq.s32.totalorder %s17, 1
    %p108 = por %p106, %p107
    %p110 = scmp.ne.s32.totalorder %s93, %s109
    %p111 = scmp.eq.s32.totalorder %s17, 0
    %p112 = por %p110, %p111
    %s113 = ssub.s32 %s11, %s18
    %p114 = scmp.eq.s32.totalorder %s113, 0
    %s116 = sadd.s32 %s115, 1
    %s117 = scalar_select %p114, %s115, %s116
    %p120 = pneg %p114
    %p121 = scmp.eq.s32.totalorder %s11, 1
    %p122 = por %p120, %p121
    %p123 = scmp.ne.s32.totalorder %s115, %s118
    %p124 = scmp.eq.s32.totalorder %s11, 0
    %p125 = por %p123, %p124
    %p126 = scmp.ne.s32.totalorder %s115, %s118
    %p127 = scmp.eq.s32.totalorder %s16, 1
    %p128 = por %p126, %p127
    %p129 = scmp.ne.s32.totalorder %s118, %s119
    %p130 = scmp.eq.s32.totalorder %s16, 0
    %p131 = por %p129, %p130
    %p132 = scmp.ne.s32.totalorder %s118, %s119
    %p133 = scmp.eq.s32.totalorder %s17, 1
    %p134 = por %p132, %p133
    %p136 = scmp.ne.s32.totalorder %s119, %s135
    %p137 = scmp.eq.s32.totalorder %s17, 0
    %p138 = por %p136, %p137
    %p139 = scmp.le.s32.totalorder 1, %s11
    %p140 = scmp.lt.s32.totalorder %s11, 3
    %p141 = pnand %p139, %p140
    %p142 = pneg %p141
    // Predicated region
    $region9: #{conv_bn_relu.2} parent=5 // pred_check
      _
    $region10: #{conv_bn_relu.2} parent=5 // pred_check_branch
      %144 = sbr.rel (%p141) target = $region12
    $region11: #{conv_bn_relu.2} parent=5 // pred_region
      %s145 = ssub.s32 %s11, 1
      // Predicated region
      $region13: #{conv_bn_relu.2} parent=11 // pred_check
        %p146 = pneg %p58
      $region14: #{conv_bn_relu.2} parent=11 // pred_check_branch
        %148 = sbr.rel (%p146) target = $region16
      $region15: #{conv_bn_relu.2} parent=11 // pred_region
        _
      $region16: #{conv_bn_relu.2} parent=11 // pred_fallthru
        _
      // Predicated region
      $region17: #{conv_bn_relu.2} parent=11 // pred_check
        %p149 = pneg %p79
      $region18: #{conv_bn_relu.2} parent=11 // pred_check_branch
        %151 = sbr.rel (%p149) target = $region20
      $region19: #{conv_bn_relu.2} parent=11 // pred_region
        _
      $region20: #{conv_bn_relu.2} parent=11 // pred_fallthru
        _
    $region12: #{conv_bn_relu.2} parent=5 // pred_fallthru
      _
    %p152 = scmp.lt.s32.totalorder %s11, 2
    // Predicated region
    $region21: #{conv_bn_relu.2} parent=5 // pred_check
      %p153 = pneg %p152
    $region22: #{conv_bn_relu.2} parent=5 // pred_check_branch
      %155 = sbr.rel (%p153) target = $region24
    $region23: #{conv_bn_relu.2} parent=5 // pred_region
      // Predicated region
      $region25: #{conv_bn_relu.2} parent=23 // pred_check
        %p156 = pneg %p31
      $region26: #{conv_bn_relu.2} parent=23 // pred_check_branch
        %158 = sbr.rel (%p156) target = $region28
      $region27: #{conv_bn_relu.2} parent=23 // pred_region
        %p159 = scmp.lt.s32.totalorder %s11, 1
        %s160 = scalar_select %p159, %s11, 1
        %s161 = smul.addr %s160, 33
        %s162 = smul.addr %s161, 8
        %s163 = scalar_lea.vmem %s0, %s162
      $region28: #{conv_bn_relu.2} parent=23 // pred_fallthru
        _
    $region24: #{conv_bn_relu.2} parent=5 // pred_fallthru
      _
    %p164 = scmp.le.s32.totalorder 1, %s11
    %p165 = scmp.lt.s32.totalorder %s11, 3
    %p166 = pnand %p164, %p165
    %p167 = pneg %p166
    // Predicated region
    $region29: #{conv_bn_relu.2} parent=5 // pred_check
      _
    $region30: #{conv_bn_relu.2} parent=5 // pred_check_branch
      %169 = sbr.rel (%p166) target = $region32
    $region31: #{conv_bn_relu.2} parent=5 // pred_region
      %s170 = ssub.s32 %s11, 1
      %p171 = scmp.lt.s32.totalorder %s16, 1
      %s172 = scalar_select %p171, %s16, 1
      %s173 = smul.addr %s172, 33
      %s174 = smul.addr %s173, 8
      %s175 = scalar_lea.vmem %s0, %s174
      %p176 = pneg %p37
      %p177 = pneg %p34
      %p178 = pneg %p58
      %p179 = pneg %p55
      %p180 = pneg %p79
      %p181 = pneg %p76
      %p182 = pneg %p105
      %p183 = pneg %p102
      %p184 = scmp.lt.s32.totalorder %s16, 1
      %s185 = scalar_select %p184, %s16, 1
      %s186 = smul.addr %s185, 28
      %s187 = smul.addr %s186, 8
      %s188 = scalar_lea.vmem %s3, %s187
      %p189 = pneg %p131
      %p190 = pneg %p128
      %p191 = scmp.lt.s32.totalorder %s16, 1
      %s192 = scalar_select %p191, %s16, 1
      %s193 = smul.addr %s192, 2
      %s194 = scalar_lea.vmem %s4, %s193
      %p195 = scmp.lt.s32.totalorder %s16, 1
      %s196 = scalar_select %p195, %s16, 1
      %s197 = smul.addr %s196, 33
      %s198 = smul.addr %s197, 8
      %s199 = scalar_lea.vmem %s0, %s198
      %p200 = scmp.lt.s32.totalorder %s16, 1
      %s201 = scalar_select %p200, %s16, 1
      %s202 = smul.addr %s201, 28
      %s203 = smul.addr %s202, 8
      %s204 = scalar_lea.vmem %s3, %s203
      %p205 = scmp.lt.s32.totalorder %s16, 1
      %s206 = scalar_select %p205, %s16, 1
      %s207 = smul.addr %s206, 2
      %s208 = scalar_lea.vmem %s4, %s207
      %v209 = vld [vmem:[%s199] sm:$0xff]
      %v210 = vld [vmem:[%s199 + $0x8] sm:$0xff]
      %v211 = vld [vmem:[%s199 + $0x10] sm:$0xff]
      %v212 = vld [vmem:[%s199 + $0x18] sm:$0xff]
      %v213 = vld [vmem:[%s199 + $0x20] sm:$0xff]
      %v214 = vld [vmem:[%s199 + $0x28] sm:$0xff]
      %v215 = vld [vmem:[%s199 + $0x30] sm:$0xff]
      %v216 = vld [vmem:[%s199 + $0x38] sm:$0xff]
      %v217 = vld [vmem:[%s199 + $0x40] sm:$0xff]
      %v218 = vld [vmem:[%s199 + $0x48] sm:$0xff]
      %v219 = vld [vmem:[%s199 + $0x50] sm:$0xff]
      %v220 = vld [vmem:[%s199 + $0x58] sm:$0xff]
      %v221 = vld [vmem:[%s199 + $0x60] sm:$0xff]
      %v222 = vld [vmem:[%s199 + $0x68] sm:$0xff]
      %v223 = vld [vmem:[%s199 + $0x70] sm:$0xff]
      %v224 = vld [vmem:[%s199 + $0x78] sm:$0xff]
      %v225 = vld [vmem:[%s199 + $0x80] sm:$0xff]
      %v226 = vld [vmem:[%s199 + $0x88] sm:$0xff]
      %v227 = vld [vmem:[%s199 + $0x90] sm:$0xff]
      %v228 = vld [vmem:[%s199 + $0x98] sm:$0xff]
      %v229 = vld [vmem:[%s199 + $0xa0] sm:$0xff]
      %v230 = vld [vmem:[%s199 + $0xa8] sm:$0xff]
      %v231 = vld [vmem:[%s199 + $0xb0] sm:$0xff]
      %v232 = vld [vmem:[%s199 + $0xb8] sm:$0xff]
      %v233 = vld [vmem:[%s199 + $0xc0] sm:$0xff]
      %v234 = vld [vmem:[%s199 + $0xc8] sm:$0xff]
      %v235 = vld [vmem:[%s199 + $0xd0] sm:$0xff]
      %v236 = vld [vmem:[%s199 + $0xd8] sm:$0xff]
      %v237 = vld [vmem:[%s199 + $0x1] sm:$0xff]
      %v238 = vld [vmem:[%s199 + $0x9] sm:$0xff]
      %v239 = vld [vmem:[%s199 + $0x11] sm:$0xff]
      %v240 = vld [vmem:[%s199 + $0x19] sm:$0xff]
      %v241 = vld [vmem:[%s199 + $0x21] sm:$0xff]
      %v242 = vld [vmem:[%s199 + $0x29] sm:$0xff]
      %v243 = vld [vmem:[%s199 + $0x31] sm:$0xff]
      %v244 = vld [vmem:[%s199 + $0x39] sm:$0xff]
      %v245 = vld [vmem:[%s199 + $0x41] sm:$0xff]
      %v246 = vld [vmem:[%s199 + $0x49] sm:$0xff]
      %v247 = vld [vmem:[%s199 + $0x51] sm:$0xff]
      %v248 = vld [vmem:[%s199 + $0x59] sm:$0xff]
      %v249 = vld [vmem:[%s199 + $0x61] sm:$0xff]
      %v250 = vld [vmem:[%s199 + $0x69] sm:$0xff]
      %v251 = vld [vmem:[%s199 + $0x71] sm:$0xff]
      %v252 = vld [vmem:[%s199 + $0x79] sm:$0xff]
      %v253 = vld [vmem:[%s199 + $0x81] sm:$0xff]
      %v254 = vld [vmem:[%s199 + $0x89] sm:$0xff]
      %v255 = vld [vmem:[%s199 + $0x91] sm:$0xff]
      %v256 = vld [vmem:[%s199 + $0x99] sm:$0xff]
      %v257 = vld [vmem:[%s199 + $0xa1] sm:$0xff]
      %v258 = vld [vmem:[%s199 + $0xa9] sm:$0xff]
      %v259 = vld [vmem:[%s199 + $0xb1] sm:$0xff]
      %v260 = vld [vmem:[%s199 + $0xb9] sm:$0xff]
      %v261 = vld [vmem:[%s199 + $0xc1] sm:$0xff]
      %v262 = vld [vmem:[%s199 + $0xc9] sm:$0xff]
      %v263 = vld [vmem:[%s199 + $0xd1] sm:$0xff]
      %v264 = vld [vmem:[%s199 + $0xd9] sm:$0xff]
      %v265 = vld [vmem:[%s199 + $0x2] sm:$0xff]
      %v266 = vld [vmem:[%s199 + $0xa] sm:$0xff]
      %v267 = vld [vmem:[%s199 + $0x12] sm:$0xff]
      %v268 = vld [vmem:[%s199 + $0x1a] sm:$0xff]
      %v269 = vld [vmem:[%s199 + $0x22] sm:$0xff]
      %v270 = vld [vmem:[%s199 + $0x2a] sm:$0xff]
      %v271 = vld [vmem:[%s199 + $0x32] sm:$0xff]
      %v272 = vld [vmem:[%s199 + $0x3a] sm:$0xff]
      %v273 = vld [vmem:[%s199 + $0x42] sm:$0xff]
      %v274 = vld [vmem:[%s199 + $0x4a] sm:$0xff]
      %v275 = vld [vmem:[%s199 + $0x52] sm:$0xff]
      %v276 = vld [vmem:[%s199 + $0x5a] sm:$0xff]
      %v277 = vld [vmem:[%s199 + $0x62] sm:$0xff]
      %v278 = vld [vmem:[%s199 + $0x6a] sm:$0xff]
      %v279 = vld [vmem:[%s199 + $0x72] sm:$0xff]
      %v280 = vld [vmem:[%s199 + $0x7a] sm:$0xff]
      %v281 = vld [vmem:[%s199 + $0x82] sm:$0xff]
      %v282 = vld [vmem:[%s199 + $0x8a] sm:$0xff]
      %v283 = vld [vmem:[%s199 + $0x92] sm:$0xff]
      %v284 = vld [vmem:[%s199 + $0x9a] sm:$0xff]
      %v285 = vld [vmem:[%s199 + $0xa2] sm:$0xff]
      %v286 = vld [vmem:[%s199 + $0xaa] sm:$0xff]
      %v287 = vld [vmem:[%s199 + $0xb2] sm:$0xff]
      %v288 = vld [vmem:[%s199 + $0xba] sm:$0xff]
      %v289 = vld [vmem:[%s199 + $0xc2] sm:$0xff]
      %v290 = vld [vmem:[%s199 + $0xca] sm:$0xff]
      %v291 = vld [vmem:[%s199 + $0xd2] sm:$0xff]
      %v292 = vld [vmem:[%s199 + $0xda] sm:$0xff]
      %v293 = vld [vmem:[%s199 + $0xe0] sm:$0xff]
      %v294 = vld [vmem:[%s199 + $0xe8] sm:$0xff]
      %v295 = vld [vmem:[%s199 + $0xe1] sm:$0xff]
      %v296 = vld [vmem:[%s199 + $0xe9] sm:$0xff]
      %v297 = vld [vmem:[%s199 + $0xe2] sm:$0xff]
      %v298 = vld [vmem:[%s199 + $0xea] sm:$0xff]
      %v299 = vld [vmem:[%s199 + $0xf0] sm:$0xff]
      %v300 = vld [vmem:[%s199 + $0xf8] sm:$0xff]
      %v301 = vld [vmem:[%s199 + $0xf1] sm:$0xff]
      %v302 = vld [vmem:[%s199 + $0xf9] sm:$0xff]
      %v303 = vld [vmem:[%s199 + $0xf2] sm:$0xff]
      %v304 = vld [vmem:[%s199 + $0xfa] sm:$0xff]
      %333 = vrot.lane.b32.xlu0 %v237, 4
      %v334 = vpop.permute.xlu0 %333
      %335 = vrot.lane.b32.xlu0 %v238, 4
      %v336 = vpop.permute.xlu0 %335
      %337 = vrot.lane.b32.xlu0 %v239, 4
      %v338 = vpop.permute.xlu0 %337
      %339 = vrot.lane.b32.xlu0 %v240, 4
      %v340 = vpop.permute.xlu0 %339
      %341 = vrot.lane.b32.xlu0 %v241, 4
      %v342 = vpop.permute.xlu0 %341
      %343 = vrot.lane.b32.xlu0 %v242, 4
      %v344 = vpop.permute.xlu0 %343
      %345 = vrot.lane.b32.xlu0 %v243, 4
      %v346 = vpop.permute.xlu0 %345
      %347 = vrot.lane.b32.xlu0 %v244, 4
      %v348 = vpop.permute.xlu0 %347
      %349 = vrot.lane.b32.xlu0 %v245, 4
      %v350 = vpop.permute.xlu0 %349
      %351 = vrot.lane.b32.xlu0 %v246, 4
      %v352 = vpop.permute.xlu0 %351
      %353 = vrot.lane.b32.xlu0 %v247, 4
      %v354 = vpop.permute.xlu0 %353
      %355 = vrot.lane.b32.xlu0 %v248, 4
      %v356 = vpop.permute.xlu0 %355
      %357 = vrot.lane.b32.xlu0 %v249, 4
      %v358 = vpop.permute.xlu0 %357
      %359 = vrot.lane.b32.xlu0 %v250, 4
      %v360 = vpop.permute.xlu0 %359
      %361 = vrot.lane.b32.xlu0 %v251, 4
      %v362 = vpop.permute.xlu0 %361
      %363 = vrot.lane.b32.xlu0 %v252, 4
      %v364 = vpop.permute.xlu0 %363
      %365 = vrot.lane.b32.xlu0 %v253, 4
      %v366 = vpop.permute.xlu0 %365
      %367 = vrot.lane.b32.xlu0 %v254, 4
      %v368 = vpop.permute.xlu0 %367
      %369 = vrot.lane.b32.xlu0 %v255, 4
      %v370 = vpop.permute.xlu0 %369
      %371 = vrot.lane.b32.xlu0 %v256, 4
      %v372 = vpop.permute.xlu0 %371
      %373 = vrot.lane.b32.xlu0 %v257, 4
      %v374 = vpop.permute.xlu0 %373
      %375 = vrot.lane.b32.xlu0 %v258, 4
      %v376 = vpop.permute.xlu0 %375
      %377 = vrot.lane.b32.xlu0 %v259, 4
      %v378 = vpop.permute.xlu0 %377
      %379 = vrot.lane.b32.xlu0 %v260, 4
      %v380 = vpop.permute.xlu0 %379
      %381 = vrot.lane.b32.xlu0 %v261, 4
      %v382 = vpop.permute.xlu0 %381
      %383 = vrot.lane.b32.xlu0 %v262, 4
      %v384 = vpop.permute.xlu0 %383
      %385 = vrot.lane.b32.xlu0 %v263, 4
      %v386 = vpop.permute.xlu0 %385
      %387 = vrot.lane.b32.xlu0 %v264, 4
      %v388 = vpop.permute.xlu0 %387
      %445 = vrot.lane.b32.xlu0 %v265, 8
      %v446 = vpop.permute.xlu0 %445
      %447 = vrot.lane.b32.xlu0 %v266, 8
      %v448 = vpop.permute.xlu0 %447
      %449 = vrot.lane.b32.xlu0 %v267, 8
      %v450 = vpop.permute.xlu0 %449
      %451 = vrot.lane.b32.xlu0 %v268, 8
      %v452 = vpop.permute.xlu0 %451
      %453 = vrot.lane.b32.xlu0 %v269, 8
      %v454 = vpop.permute.xlu0 %453
      %455 = vrot.lane.b32.xlu0 %v270, 8
      %v456 = vpop.permute.xlu0 %455
      %457 = vrot.lane.b32.xlu0 %v271, 8
      %v458 = vpop.permute.xlu0 %457
      %459 = vrot.lane.b32.xlu0 %v272, 8
      %v460 = vpop.permute.xlu0 %459
      %461 = vrot.lane.b32.xlu0 %v273, 8
      %v462 = vpop.permute.xlu0 %461
      %463 = vrot.lane.b32.xlu0 %v274, 8
      %v464 = vpop.permute.xlu0 %463
      %465 = vrot.lane.b32.xlu0 %v275, 8
      %v466 = vpop.permute.xlu0 %465
      %467 = vrot.lane.b32.xlu0 %v276, 8
      %v468 = vpop.permute.xlu0 %467
      %469 = vrot.lane.b32.xlu0 %v277, 8
      %v470 = vpop.permute.xlu0 %469
      %471 = vrot.lane.b32.xlu0 %v278, 8
      %v472 = vpop.permute.xlu0 %471
      %473 = vrot.lane.b32.xlu0 %v279, 8
      %v474 = vpop.permute.xlu0 %473
      %475 = vrot.lane.b32.xlu0 %v280, 8
      %v476 = vpop.permute.xlu0 %475
      %477 = vrot.lane.b32.xlu0 %v281, 8
      %v478 = vpop.permute.xlu0 %477
      %479 = vrot.lane.b32.xlu0 %v282, 8
      %v480 = vpop.permute.xlu0 %479
      %481 = vrot.lane.b32.xlu0 %v283, 8
      %v482 = vpop.permute.xlu0 %481
      %483 = vrot.lane.b32.xlu0 %v284, 8
      %v484 = vpop.permute.xlu0 %483
      %485 = vrot.lane.b32.xlu0 %v285, 8
      %v486 = vpop.permute.xlu0 %485
      %487 = vrot.lane.b32.xlu0 %v286, 8
      %v488 = vpop.permute.xlu0 %487
      %489 = vrot.lane.b32.xlu0 %v287, 8
      %v490 = vpop.permute.xlu0 %489
      %491 = vrot.lane.b32.xlu0 %v288, 8
      %v492 = vpop.permute.xlu0 %491
      %493 = vrot.lane.b32.xlu0 %v289, 8
      %v494 = vpop.permute.xlu0 %493
      %495 = vrot.lane.b32.xlu0 %v290, 8
      %v496 = vpop.permute.xlu0 %495
      %497 = vrot.lane.b32.xlu0 %v291, 8
      %v498 = vpop.permute.xlu0 %497
      %499 = vrot.lane.b32.xlu0 %v292, 8
      %v500 = vpop.permute.xlu0 %499
      %557 = vrot.lane.b32.xlu0 %v211, 12
      %v558 = vpop.permute.xlu0 %557
      %559 = vrot.lane.b32.xlu0 %v212, 12
      %v560 = vpop.permute.xlu0 %559
      %561 = vrot.lane.b32.xlu0 %v213, 12
      %v562 = vpop.permute.xlu0 %561
      %563 = vrot.lane.b32.xlu0 %v214, 12
      %v564 = vpop.permute.xlu0 %563
      %565 = vrot.lane.b32.xlu0 %v215, 12
      %v566 = vpop.permute.xlu0 %565
      %567 = vrot.lane.b32.xlu0 %v216, 12
      %v568 = vpop.permute.xlu0 %567
      %569 = vrot.lane.b32.xlu0 %v217, 12
      %v570 = vpop.permute.xlu0 %569
      %571 = vrot.lane.b32.xlu0 %v218, 12
      %v572 = vpop.permute.xlu0 %571
      %573 = vrot.lane.b32.xlu0 %v219, 12
      %v574 = vpop.permute.xlu0 %573
      %575 = vrot.lane.b32.xlu0 %v220, 12
      %v576 = vpop.permute.xlu0 %575
      %577 = vrot.lane.b32.xlu0 %v221, 12
      %v578 = vpop.permute.xlu0 %577
      %579 = vrot.lane.b32.xlu0 %v222, 12
      %v580 = vpop.permute.xlu0 %579
      %581 = vrot.lane.b32.xlu0 %v223, 12
      %v582 = vpop.permute.xlu0 %581
      %583 = vrot.lane.b32.xlu0 %v224, 12
      %v584 = vpop.permute.xlu0 %583
      %585 = vrot.lane.b32.xlu0 %v225, 12
      %v586 = vpop.permute.xlu0 %585
      %587 = vrot.lane.b32.xlu0 %v226, 12
      %v588 = vpop.permute.xlu0 %587
      %589 = vrot.lane.b32.xlu0 %v227, 12
      %v590 = vpop.permute.xlu0 %589
      %591 = vrot.lane.b32.xlu0 %v228, 12
      %v592 = vpop.permute.xlu0 %591
      %593 = vrot.lane.b32.xlu0 %v229, 12
      %v594 = vpop.permute.xlu0 %593
      %595 = vrot.lane.b32.xlu0 %v230, 12
      %v596 = vpop.permute.xlu0 %595
      %597 = vrot.lane.b32.xlu0 %v231, 12
      %v598 = vpop.permute.xlu0 %597
      %599 = vrot.lane.b32.xlu0 %v232, 12
      %v600 = vpop.permute.xlu0 %599
      %601 = vrot.lane.b32.xlu0 %v233, 12
      %v602 = vpop.permute.xlu0 %601
      %603 = vrot.lane.b32.xlu0 %v234, 12
      %v604 = vpop.permute.xlu0 %603
      %605 = vrot.lane.b32.xlu0 %v235, 12
      %v606 = vpop.permute.xlu0 %605
      %607 = vrot.lane.b32.xlu0 %v236, 12
      %v608 = vpop.permute.xlu0 %607
      %609 = vrot.lane.b32.xlu0 %v293, 12
      %v610 = vpop.permute.xlu0 %609
      %611 = vrot.lane.b32.xlu0 %v294, 12
      %v612 = vpop.permute.xlu0 %611
      %643 = vrot.lane.b32.xlu0 %v239, 16
      %v644 = vpop.permute.xlu0 %643
      %645 = vrot.lane.b32.xlu0 %v240, 16
      %v646 = vpop.permute.xlu0 %645
      %647 = vrot.lane.b32.xlu0 %v241, 16
      %v648 = vpop.permute.xlu0 %647
      %649 = vrot.lane.b32.xlu0 %v242, 16
      %v650 = vpop.permute.xlu0 %649
      %651 = vrot.lane.b32.xlu0 %v243, 16
      %v652 = vpop.permute.xlu0 %651
      %653 = vrot.lane.b32.xlu0 %v244, 16
      %v654 = vpop.permute.xlu0 %653
      %655 = vrot.lane.b32.xlu0 %v245, 16
      %v656 = vpop.permute.xlu0 %655
      %657 = vrot.lane.b32.xlu0 %v246, 16
      %v658 = vpop.permute.xlu0 %657
      %659 = vrot.lane.b32.xlu0 %v247, 16
      %v660 = vpop.permute.xlu0 %659
      %661 = vrot.lane.b32.xlu0 %v248, 16
      %v662 = vpop.permute.xlu0 %661
      %663 = vrot.lane.b32.xlu0 %v249, 16
      %v664 = vpop.permute.xlu0 %663
      %665 = vrot.lane.b32.xlu0 %v250, 16
      %v666 = vpop.permute.xlu0 %665
      %667 = vrot.lane.b32.xlu0 %v251, 16
      %v668 = vpop.permute.xlu0 %667
      %669 = vrot.lane.b32.xlu0 %v252, 16
      %v670 = vpop.permute.xlu0 %669
      %671 = vrot.lane.b32.xlu0 %v253, 16
      %v672 = vpop.permute.xlu0 %671
      %673 = vrot.lane.b32.xlu0 %v254, 16
      %v674 = vpop.permute.xlu0 %673
      %675 = vrot.lane.b32.xlu0 %v255, 16
      %v676 = vpop.permute.xlu0 %675
      %677 = vrot.lane.b32.xlu0 %v256, 16
      %v678 = vpop.permute.xlu0 %677
      %679 = vrot.lane.b32.xlu0 %v257, 16
      %v680 = vpop.permute.xlu0 %679
      %681 = vrot.lane.b32.xlu0 %v258, 16
      %v682 = vpop.permute.xlu0 %681
      %683 = vrot.lane.b32.xlu0 %v259, 16
      %v684 = vpop.permute.xlu0 %683
      %685 = vrot.lane.b32.xlu0 %v260, 16
      %v686 = vpop.permute.xlu0 %685
      %687 = vrot.lane.b32.xlu0 %v261, 16
      %v688 = vpop.permute.xlu0 %687
      %689 = vrot.lane.b32.xlu0 %v262, 16
      %v690 = vpop.permute.xlu0 %689
      %691 = vrot.lane.b32.xlu0 %v263, 16
      %v692 = vpop.permute.xlu0 %691
      %693 = vrot.lane.b32.xlu0 %v264, 16
      %v694 = vpop.permute.xlu0 %693
      %695 = vrot.lane.b32.xlu0 %v295, 16
      %v696 = vpop.permute.xlu0 %695
      %697 = vrot.lane.b32.xlu0 %v296, 16
      %v698 = vpop.permute.xlu0 %697
      %729 = vrot.lane.b32.xlu0 %v267, 20
      %v730 = vpop.permute.xlu0 %729
      %731 = vrot.lane.b32.xlu0 %v268, 20
      %v732 = vpop.permute.xlu0 %731
      %733 = vrot.lane.b32.xlu0 %v269, 20
      %v734 = vpop.permute.xlu0 %733
      %735 = vrot.lane.b32.xlu0 %v270, 20
      %v736 = vpop.permute.xlu0 %735
      %737 = vrot.lane.b32.xlu0 %v271, 20
      %v738 = vpop.permute.xlu0 %737
      %739 = vrot.lane.b32.xlu0 %v272, 20
      %v740 = vpop.permute.xlu0 %739
      %741 = vrot.lane.b32.xlu0 %v273, 20
      %v742 = vpop.permute.xlu0 %741
      %743 = vrot.lane.b32.xlu0 %v274, 20
      %v744 = vpop.permute.xlu0 %743
      %745 = vrot.lane.b32.xlu0 %v275, 20
      %v746 = vpop.permute.xlu0 %745
      %747 = vrot.lane.b32.xlu0 %v276, 20
      %v748 = vpop.permute.xlu0 %747
      %749 = vrot.lane.b32.xlu0 %v277, 20
      %v750 = vpop.permute.xlu0 %749
      %751 = vrot.lane.b32.xlu0 %v278, 20
      %v752 = vpop.permute.xlu0 %751
      %753 = vrot.lane.b32.xlu0 %v279, 20
      %v754 = vpop.permute.xlu0 %753
      %755 = vrot.lane.b32.xlu0 %v280, 20
      %v756 = vpop.permute.xlu0 %755
      %757 = vrot.lane.b32.xlu0 %v281, 20
      %v758 = vpop.permute.xlu0 %757
      %759 = vrot.lane.b32.xlu0 %v282, 20
      %v760 = vpop.permute.xlu0 %759
      %761 = vrot.lane.b32.xlu0 %v283, 20
      %v762 = vpop.permute.xlu0 %761
      %763 = vrot.lane.b32.xlu0 %v284, 20
      %v764 = vpop.permute.xlu0 %763
      %765 = vrot.lane.b32.xlu0 %v285, 20
      %v766 = vpop.permute.xlu0 %765
      %767 = vrot.lane.b32.xlu0 %v286, 20
      %v768 = vpop.permute.xlu0 %767
      %769 = vrot.lane.b32.xlu0 %v287, 20
      %v770 = vpop.permute.xlu0 %769
      %771 = vrot.lane.b32.xlu0 %v288, 20
      %v772 = vpop.permute.xlu0 %771
      %773 = vrot.lane.b32.xlu0 %v289, 20
      %v774 = vpop.permute.xlu0 %773
      %775 = vrot.lane.b32.xlu0 %v290, 20
      %v776 = vpop.permute.xlu0 %775
      %777 = vrot.lane.b32.xlu0 %v291, 20
      %v778 = vpop.permute.xlu0 %777
      %779 = vrot.lane.b32.xlu0 %v292, 20
      %v780 = vpop.permute.xlu0 %779
      %781 = vrot.lane.b32.xlu0 %v297, 20
      %v782 = vpop.permute.xlu0 %781
      %783 = vrot.lane.b32.xlu0 %v298, 20
      %v784 = vpop.permute.xlu0 %783
      %815 = vrot.lane.b32.xlu0 %v213, 24
      %v816 = vpop.permute.xlu0 %815
      %817 = vrot.lane.b32.xlu0 %v214, 24
      %v818 = vpop.permute.xlu0 %817
      %819 = vrot.lane.b32.xlu0 %v215, 24
      %v820 = vpop.permute.xlu0 %819
      %821 = vrot.lane.b32.xlu0 %v216, 24
      %v822 = vpop.permute.xlu0 %821
      %823 = vrot.lane.b32.xlu0 %v217, 24
      %v824 = vpop.permute.xlu0 %823
      %825 = vrot.lane.b32.xlu0 %v218, 24
      %v826 = vpop.permute.xlu0 %825
      %827 = vrot.lane.b32.xlu0 %v219, 24
      %v828 = vpop.permute.xlu0 %827
      %829 = vrot.lane.b32.xlu0 %v220, 24
      %v830 = vpop.permute.xlu0 %829
      %831 = vrot.lane.b32.xlu0 %v221, 24
      %v832 = vpop.permute.xlu0 %831
      %833 = vrot.lane.b32.xlu0 %v222, 24
      %v834 = vpop.permute.xlu0 %833
      %835 = vrot.lane.b32.xlu0 %v223, 24
      %v836 = vpop.permute.xlu0 %835
      %837 = vrot.lane.b32.xlu0 %v224, 24
      %v838 = vpop.permute.xlu0 %837
      %839 = vrot.lane.b32.xlu0 %v225, 24
      %v840 = vpop.permute.xlu0 %839
      %841 = vrot.lane.b32.xlu0 %v226, 24
      %v842 = vpop.permute.xlu0 %841
      %843 = vrot.lane.b32.xlu0 %v227, 24
      %v844 = vpop.permute.xlu0 %843
      %845 = vrot.lane.b32.xlu0 %v228, 24
      %v846 = vpop.permute.xlu0 %845
      %847 = vrot.lane.b32.xlu0 %v229, 24
      %v848 = vpop.permute.xlu0 %847
      %849 = vrot.lane.b32.xlu0 %v230, 24
      %v850 = vpop.permute.xlu0 %849
      %851 = vrot.lane.b32.xlu0 %v231, 24
      %v852 = vpop.permute.xlu0 %851
      %853 = vrot.lane.b32.xlu0 %v232, 24
      %v854 = vpop.permute.xlu0 %853
      %855 = vrot.lane.b32.xlu0 %v233, 24
      %v856 = vpop.permute.xlu0 %855
      %857 = vrot.lane.b32.xlu0 %v234, 24
      %v858 = vpop.permute.xlu0 %857
      %859 = vrot.lane.b32.xlu0 %v235, 24
      %v860 = vpop.permute.xlu0 %859
      %861 = vrot.lane.b32.xlu0 %v236, 24
      %v862 = vpop.permute.xlu0 %861
      %863 = vrot.lane.b32.xlu0 %v293, 24
      %v864 = vpop.permute.xlu0 %863
      %865 = vrot.lane.b32.xlu0 %v294, 24
      %v866 = vpop.permute.xlu0 %865
      %867 = vrot.lane.b32.xlu0 %v299, 24
      %v868 = vpop.permute.xlu0 %867
      %869 = vrot.lane.b32.xlu0 %v300, 24
      %v870 = vpop.permute.xlu0 %869
      %901 = vrot.lane.b32.xlu0 %v241, 28
      %v902 = vpop.permute.xlu0 %901
      %903 = vrot.lane.b32.xlu0 %v242, 28
      %v904 = vpop.permute.xlu0 %903
      %905 = vrot.lane.b32.xlu0 %v243, 28
      %v906 = vpop.permute.xlu0 %905
      %907 = vrot.lane.b32.xlu0 %v244, 28
      %v908 = vpop.permute.xlu0 %907
      %909 = vrot.lane.b32.xlu0 %v245, 28
      %v910 = vpop.permute.xlu0 %909
      %911 = vrot.lane.b32.xlu0 %v246, 28
      %v912 = vpop.permute.xlu0 %911
      %913 = vrot.lane.b32.xlu0 %v247, 28
      %v914 = vpop.permute.xlu0 %913
      %915 = vrot.lane.b32.xlu0 %v248, 28
      %v916 = vpop.permute.xlu0 %915
      %917 = vrot.lane.b32.xlu0 %v249, 28
      %v918 = vpop.permute.xlu0 %917
      %919 = vrot.lane.b32.xlu0 %v250, 28
      %v920 = vpop.permute.xlu0 %919
      %921 = vrot.lane.b32.xlu0 %v251, 28
      %v922 = vpop.permute.xlu0 %921
      %923 = vrot.lane.b32.xlu0 %v252, 28
      %v924 = vpop.permute.xlu0 %923
      %925 = vrot.lane.b32.xlu0 %v253, 28
      %v926 = vpop.permute.xlu0 %925
      %927 = vrot.lane.b32.xlu0 %v254, 28
      %v928 = vpop.permute.xlu0 %927
      %929 = vrot.lane.b32.xlu0 %v255, 28
      %v930 = vpop.permute.xlu0 %929
      %931 = vrot.lane.b32.xlu0 %v256, 28
      %v932 = vpop.permute.xlu0 %931
      %933 = vrot.lane.b32.xlu0 %v257, 28
      %v934 = vpop.permute.xlu0 %933
      %935 = vrot.lane.b32.xlu0 %v258, 28
      %v936 = vpop.permute.xlu0 %935
      %937 = vrot.lane.b32.xlu0 %v259, 28
      %v938 = vpop.permute.xlu0 %937
      %939 = vrot.lane.b32.xlu0 %v260, 28
      %v940 = vpop.permute.xlu0 %939
      %941 = vrot.lane.b32.xlu0 %v261, 28
      %v942 = vpop.permute.xlu0 %941
      %943 = vrot.lane.b32.xlu0 %v262, 28
      %v944 = vpop.permute.xlu0 %943
      %945 = vrot.lane.b32.xlu0 %v263, 28
      %v946 = vpop.permute.xlu0 %945
      %947 = vrot.lane.b32.xlu0 %v264, 28
      %v948 = vpop.permute.xlu0 %947
      %949 = vrot.lane.b32.xlu0 %v295, 28
      %v950 = vpop.permute.xlu0 %949
      %951 = vrot.lane.b32.xlu0 %v296, 28
      %v952 = vpop.permute.xlu0 %951
      %953 = vrot.lane.b32.xlu0 %v301, 28
      %v954 = vpop.permute.xlu0 %953
      %955 = vrot.lane.b32.xlu0 %v302, 28
      %v956 = vpop.permute.xlu0 %955
      %987 = vrot.lane.b32.xlu0 %v269, 32
      %v988 = vpop.permute.xlu0 %987
      %989 = vrot.lane.b32.xlu0 %v270, 32
      %v990 = vpop.permute.xlu0 %989
      %991 = vrot.lane.b32.xlu0 %v271, 32
      %v992 = vpop.permute.xlu0 %991
      %993 = vrot.lane.b32.xlu0 %v272, 32
      %v994 = vpop.permute.xlu0 %993
      %995 = vrot.lane.b32.xlu0 %v273, 32
      %v996 = vpop.permute.xlu0 %995
      %997 = vrot.lane.b32.xlu0 %v274, 32
      %v998 = vpop.permute.xlu0 %997
      %999 = vrot.lane.b32.xlu0 %v275, 32
      %v1000 = vpop.permute.xlu0 %999
      %1001 = vrot.lane.b32.xlu0 %v276, 32
      %v1002 = vpop.permute.xlu0 %1001
      %1003 = vrot.lane.b32.xlu0 %v277, 32
      %v1004 = vpop.permute.xlu0 %1003
      %1005 = vrot.lane.b32.xlu0 %v278, 32
      %v1006 = vpop.permute.xlu0 %1005
      %1007 = vrot.lane.b32.xlu0 %v279, 32
      %v1008 = vpop.permute.xlu0 %1007
      %1009 = vrot.lane.b32.xlu0 %v280, 32
      %v1010 = vpop.permute.xlu0 %1009
      %1011 = vrot.lane.b32.xlu0 %v281, 32
      %v1012 = vpop.permute.xlu0 %1011
      %1013 = vrot.lane.b32.xlu0 %v282, 32
      %v1014 = vpop.permute.xlu0 %1013
      %1015 = vrot.lane.b32.xlu0 %v283, 32
      %v1016 = vpop.permute.xlu0 %1015
      %1017 = vrot.lane.b32.xlu0 %v284, 32
      %v1018 = vpop.permute.xlu0 %1017
      %1019 = vrot.lane.b32.xlu0 %v285, 32
      %v1020 = vpop.permute.xlu0 %1019
      %1021 = vrot.lane.b32.xlu0 %v286, 32
      %v1022 = vpop.permute.xlu0 %1021
      %1023 = vrot.lane.b32.xlu0 %v287, 32
      %v1024 = vpop.permute.xlu0 %1023
      %1025 = vrot.lane.b32.xlu0 %v288, 32
      %v1026 = vpop.permute.xlu0 %1025
      %1027 = vrot.lane.b32.xlu0 %v289, 32
      %v1028 = vpop.permute.xlu0 %1027
      %1029 = vrot.lane.b32.xlu0 %v290, 32
      %v1030 = vpop.permute.xlu0 %1029
      %1031 = vrot.lane.b32.xlu0 %v291, 32
      %v1032 = vpop.permute.xlu0 %1031
      %1033 = vrot.lane.b32.xlu0 %v292, 32
      %v1034 = vpop.permute.xlu0 %1033
      %1035 = vrot.lane.b32.xlu0 %v297, 32
      %v1036 = vpop.permute.xlu0 %1035
      %1037 = vrot.lane.b32.xlu0 %v298, 32
      %v1038 = vpop.permute.xlu0 %1037
      %1039 = vrot.lane.b32.xlu0 %v303, 32
      %v1040 = vpop.permute.xlu0 %1039
      %1041 = vrot.lane.b32.xlu0 %v304, 32
      %v1042 = vpop.permute.xlu0 %1041
      %vm1071 = vcmask 31744
      %v1072 = vsel %vm1071, %v209, %v334
      %v1073 = vsel %vm1071, %v210, %v336
      %v1074 = vsel %vm1071, %v211, %v338
      %v1075 = vsel %vm1071, %v212, %v340
      %v1076 = vsel %vm1071, %v213, %v342
      %v1077 = vsel %vm1071, %v214, %v344
      %v1078 = vsel %vm1071, %v215, %v346
      %v1079 = vsel %vm1071, %v216, %v348
      %v1080 = vsel %vm1071, %v217, %v350
      %v1081 = vsel %vm1071, %v218, %v352
      %v1082 = vsel %vm1071, %v219, %v354
      %v1083 = vsel %vm1071, %v220, %v356
      %v1084 = vsel %vm1071, %v221, %v358
      %v1085 = vsel %vm1071, %v222, %v360
      %v1086 = vsel %vm1071, %v223, %v362
      %v1087 = vsel %vm1071, %v224, %v364
      %v1088 = vsel %vm1071, %v225, %v366
      %v1089 = vsel %vm1071, %v226, %v368
      %v1090 = vsel %vm1071, %v227, %v370
      %v1091 = vsel %vm1071, %v228, %v372
      %v1092 = vsel %vm1071, %v229, %v374
      %v1093 = vsel %vm1071, %v230, %v376
      %v1094 = vsel %vm1071, %v231, %v378
      %v1095 = vsel %vm1071, %v232, %v380
      %v1096 = vsel %vm1071, %v233, %v382
      %v1097 = vsel %vm1071, %v234, %v384
      %v1098 = vsel %vm1071, %v235, %v386
      %v1099 = vsel %vm1071, %v236, %v388
      %vm1100 = vcmask 64512
      %v1101 = vsel %vm1100, %v1072, %v446
      %v1102 = vsel %vm1100, %v1073, %v448
      %v1103 = vsel %vm1100, %v1074, %v450
      %v1104 = vsel %vm1100, %v1075, %v452
      %v1105 = vsel %vm1100, %v1076, %v454
      %v1106 = vsel %vm1100, %v1077, %v456
      %v1107 = vsel %vm1100, %v1078, %v458
      %v1108 = vsel %vm1100, %v1079, %v460
      %v1109 = vsel %vm1100, %v1080, %v462
      %v1110 = vsel %vm1100, %v1081, %v464
      %v1111 = vsel %vm1100, %v1082, %v466
      %v1112 = vsel %vm1100, %v1083, %v468
      %v1113 = vsel %vm1100, %v1084, %v470
      %v1114 = vsel %vm1100, %v1085, %v472
      %v1115 = vsel %vm1100, %v1086, %v474
      %v1116 = vsel %vm1100, %v1087, %v476
      %v1117 = vsel %vm1100, %v1088, %v478
      %v1118 = vsel %vm1100, %v1089, %v480
      %v1119 = vsel %vm1100, %v1090, %v482
      %v1120 = vsel %vm1100, %v1091, %v484
      %v1121 = vsel %vm1100, %v1092, %v486
      %v1122 = vsel %vm1100, %v1093, %v488
      %v1123 = vsel %vm1100, %v1094, %v490
      %v1124 = vsel %vm1100, %v1095, %v492
      %v1125 = vsel %vm1100, %v1096, %v494
      %v1126 = vsel %vm1100, %v1097, %v496
      %v1127 = vsel %vm1100, %v1098, %v498
      %v1128 = vsel %vm1100, %v1099, %v500
      %vm1129 = vcmask 97280
      %v1130 = vsel %vm1129, %v1101, %v558
      %v1131 = vsel %vm1129, %v1102, %v560
      %v1132 = vsel %vm1129, %v1103, %v562
      %v1133 = vsel %vm1129, %v1104, %v564
      %v1134 = vsel %vm1129, %v1105, %v566
      %v1135 = vsel %vm1129, %v1106, %v568
      %v1136 = vsel %vm1129, %v1107, %v570
      %v1137 = vsel %vm1129, %v1108, %v572
      %v1138 = vsel %vm1129, %v1109, %v574
      %v1139 = vsel %vm1129, %v1110, %v576
      %v1140 = vsel %vm1129, %v1111, %v578
      %v1141 = vsel %vm1129, %v1112, %v580
      %v1142 = vsel %vm1129, %v1113, %v582
      %v1143 = vsel %vm1129, %v1114, %v584
      %v1144 = vsel %vm1129, %v1115, %v586
      %v1145 = vsel %vm1129, %v1116, %v588
      %v1146 = vsel %vm1129, %v1117, %v590
      %v1147 = vsel %vm1129, %v1118, %v592
      %v1148 = vsel %vm1129, %v1119, %v594
      %v1149 = vsel %vm1129, %v1120, %v596
      %v1150 = vsel %vm1129, %v1121, %v598
      %v1151 = vsel %vm1129, %v1122, %v600
      %v1152 = vsel %vm1129, %v1123, %v602
      %v1153 = vsel %vm1129, %v1124, %v604
      %v1154 = vsel %vm1129, %v1125, %v606
      %v1155 = vsel %vm1129, %v1126, %v608
      %v1156 = vsel %vm1129, %v1127, %v610
      %v1157 = vsel %vm1129, %v1128, %v612
      %vm1158 = vcmask 130048
      %v1159 = vsel %vm1158, %v1130, %v644
      %v1160 = vsel %vm1158, %v1131, %v646
      %v1161 = vsel %vm1158, %v1132, %v648
      %v1162 = vsel %vm1158, %v1133, %v650
      %v1163 = vsel %vm1158, %v1134, %v652
      %v1164 = vsel %vm1158, %v1135, %v654
      %v1165 = vsel %vm1158, %v1136, %v656
      %v1166 = vsel %vm1158, %v1137, %v658
      %v1167 = vsel %vm1158, %v1138, %v660
      %v1168 = vsel %vm1158, %v1139, %v662
      %v1169 = vsel %vm1158, %v1140, %v664
      %v1170 = vsel %vm1158, %v1141, %v666
      %v1171 = vsel %vm1158, %v1142, %v668
      %v1172 = vsel %vm1158, %v1143, %v670
      %v1173 = vsel %vm1158, %v1144, %v672
      %v1174 = vsel %vm1158, %v1145, %v674
      %v1175 = vsel %vm1158, %v1146, %v676
      %v1176 = vsel %vm1158, %v1147, %v678
      %v1177 = vsel %vm1158, %v1148, %v680
      %v1178 = vsel %vm1158, %v1149, %v682
      %v1179 = vsel %vm1158, %v1150, %v684
      %v1180 = vsel %vm1158, %v1151, %v686
      %v1181 = vsel %vm1158, %v1152, %v688
      %v1182 = vsel %vm1158, %v1153, %v690
      %v1183 = vsel %vm1158, %v1154, %v692
      %v1184 = vsel %vm1158, %v1155, %v694
      %v1185 = vsel %vm1158, %v1156, %v696
      %v1186 = vsel %vm1158, %v1157, %v698
      %vm1187 = vcmask 162816
      %v1188 = vsel %vm1187, %v1159, %v730
      %v1189 = vsel %vm1187, %v1160, %v732
      %v1190 = vsel %vm1187, %v1161, %v734
      %v1191 = vsel %vm1187, %v1162, %v736
      %v1192 = vsel %vm1187, %v1163, %v738
      %v1193 = vsel %vm1187, %v1164, %v740
      %v1194 = vsel %vm1187, %v1165, %v742
      %v1195 = vsel %vm1187, %v1166, %v744
      %v1196 = vsel %vm1187, %v1167, %v746
      %v1197 = vsel %vm1187, %v1168, %v748
      %v1198 = vsel %vm1187, %v1169, %v750
      %v1199 = vsel %vm1187, %v1170, %v752
      %v1200 = vsel %vm1187, %v1171, %v754
      %v1201 = vsel %vm1187, %v1172, %v756
      %v1202 = vsel %vm1187, %v1173, %v758
      %v1203 = vsel %vm1187, %v1174, %v760
      %v1204 = vsel %vm1187, %v1175, %v762
      %v1205 = vsel %vm1187, %v1176, %v764
      %v1206 = vsel %vm1187, %v1177, %v766
      %v1207 = vsel %vm1187, %v1178, %v768
      %v1208 = vsel %vm1187, %v1179, %v770
      %v1209 = vsel %vm1187, %v1180, %v772
      %v1210 = vsel %vm1187, %v1181, %v774
      %v1211 = vsel %vm1187, %v1182, %v776
      %v1212 = vsel %vm1187, %v1183, %v778
      %v1213 = vsel %vm1187, %v1184, %v780
      %v1214 = vsel %vm1187, %v1185, %v782
      %v1215 = vsel %vm1187, %v1186, %v784
      %vm1216 = vcmask 195584
      %v1217 = vsel %vm1216, %v1188, %v816
      %v1218 = vsel %vm1216, %v1189, %v818
      %v1219 = vsel %vm1216, %v1190, %v820
      %v1220 = vsel %vm1216, %v1191, %v822
      %v1221 = vsel %vm1216, %v1192, %v824
      %v1222 = vsel %vm1216, %v1193, %v826
      %v1223 = vsel %vm1216, %v1194, %v828
      %v1224 = vsel %vm1216, %v1195, %v830
      %v1225 = vsel %vm1216, %v1196, %v832
      %v1226 = vsel %vm1216, %v1197, %v834
      %v1227 = vsel %vm1216, %v1198, %v836
      %v1228 = vsel %vm1216, %v1199, %v838
      %v1229 = vsel %vm1216, %v1200, %v840
      %v1230 = vsel %vm1216, %v1201, %v842
      %v1231 = vsel %vm1216, %v1202, %v844
      %v1232 = vsel %vm1216, %v1203, %v846
      %v1233 = vsel %vm1216, %v1204, %v848
      %v1234 = vsel %vm1216, %v1205, %v850
      %v1235 = vsel %vm1216, %v1206, %v852
      %v1236 = vsel %vm1216, %v1207, %v854
      %v1237 = vsel %vm1216, %v1208, %v856
      %v1238 = vsel %vm1216, %v1209, %v858
      %v1239 = vsel %vm1216, %v1210, %v860
      %v1240 = vsel %vm1216, %v1211, %v862
      %v1241 = vsel %vm1216, %v1212, %v864
      %v1242 = vsel %vm1216, %v1213, %v866
      %v1243 = vsel %vm1216, %v1214, %v868
      %v1244 = vsel %vm1216, %v1215, %v870
      %vm1245 = vcmask 228352
      %v1246 = vsel %vm1245, %v1217, %v902
      %v1247 = vsel %vm1245, %v1218, %v904
      %v1248 = vsel %vm1245, %v1219, %v906
      %v1249 = vsel %vm1245, %v1220, %v908
      %v1250 = vsel %vm1245, %v1221, %v910
      %v1251 = vsel %vm1245, %v1222, %v912
      %v1252 = vsel %vm1245, %v1223, %v914
      %v1253 = vsel %vm1245, %v1224, %v916
      %v1254 = vsel %vm1245, %v1225, %v918
      %v1255 = vsel %vm1245, %v1226, %v920
      %v1256 = vsel %vm1245, %v1227, %v922
      %v1257 = vsel %vm1245, %v1228, %v924
      %v1258 = vsel %vm1245, %v1229, %v926
      %v1259 = vsel %vm1245, %v1230, %v928
      %v1260 = vsel %vm1245, %v1231, %v930
      %v1261 = vsel %vm1245, %v1232, %v932
      %v1262 = vsel %vm1245, %v1233, %v934
      %v1263 = vsel %vm1245, %v1234, %v936
      %v1264 = vsel %vm1245, %v1235, %v938
      %v1265 = vsel %vm1245, %v1236, %v940
      %v1266 = vsel %vm1245, %v1237, %v942
      %v1267 = vsel %vm1245, %v1238, %v944
      %v1268 = vsel %vm1245, %v1239, %v946
      %v1269 = vsel %vm1245, %v1240, %v948
      %v1270 = vsel %vm1245, %v1241, %v950
      %v1271 = vsel %vm1245, %v1242, %v952
      %v1272 = vsel %vm1245, %v1243, %v954
      %v1273 = vsel %vm1245, %v1244, %v956
      %vm1274 = vcmask 261120
      %v1275 = vsel %vm1274, %v1246, %v988
      %v1276 = vsel %vm1274, %v1247, %v990
      %v1277 = vsel %vm1274, %v1248, %v992
      %v1278 = vsel %vm1274, %v1249, %v994
      %v1279 = vsel %vm1274, %v1250, %v996
      %v1280 = vsel %vm1274, %v1251, %v998
      %v1281 = vsel %vm1274, %v1252, %v1000
      %v1282 = vsel %vm1274, %v1253, %v1002
      %v1283 = vsel %vm1274, %v1254, %v1004
      %v1284 = vsel %vm1274, %v1255, %v1006
      %v1285 = vsel %vm1274, %v1256, %v1008
      %v1286 = vsel %vm1274, %v1257, %v1010
      %v1287 = vsel %vm1274, %v1258, %v1012
      %v1288 = vsel %vm1274, %v1259, %v1014
      %v1289 = vsel %vm1274, %v1260, %v1016
      %v1290 = vsel %vm1274, %v1261, %v1018
      %v1291 = vsel %vm1274, %v1262, %v1020
      %v1292 = vsel %vm1274, %v1263, %v1022
      %v1293 = vsel %vm1274, %v1264, %v1024
      %v1294 = vsel %vm1274, %v1265, %v1026
      %v1295 = vsel %vm1274, %v1266, %v1028
      %v1296 = vsel %vm1274, %v1267, %v1030
      %v1297 = vsel %vm1274, %v1268, %v1032
      %v1298 = vsel %vm1274, %v1269, %v1034
      %v1299 = vsel %vm1274, %v1270, %v1036
      %v1300 = vsel %vm1274, %v1271, %v1038
      %v1301 = vsel %vm1274, %v1272, %v1040
      %v1302 = vsel %vm1274, %v1273, %v1042
      %v1303 = vld [vmem:[%s1] sm:$0xff]
      %v1304 = vld [vmem:[%s1 + $0x8] sm:$0xff]
      %v1305 = vld [vmem:[%s1 + $0x10] sm:$0xff]
      %v1306 = vld [vmem:[%s1 + $0x18] sm:$0xff]
      %v1307 = vld [vmem:[%s1 + $0x20] sm:$0xf]
      %vm1308 = vcmask 293888
      %v1310 = vsel %vm1308, %v1275, 0
      %v1313 = vsel %vm1308, %v1276, 0
      %v1316 = vsel %vm1308, %v1277, 0
      %v1319 = vsel %vm1308, %v1278, 0
      %v1322 = vsel %vm1308, %v1279, 0
      %v1325 = vsel %vm1308, %v1280, 0
      %v1328 = vsel %vm1308, %v1281, 0
      %v1331 = vsel %vm1308, %v1282, 0
      %v1334 = vsel %vm1308, %v1283, 0
      %v1337 = vsel %vm1308, %v1284, 0
      %v1340 = vsel %vm1308, %v1285, 0
      %v1343 = vsel %vm1308, %v1286, 0
      %v1346 = vsel %vm1308, %v1287, 0
      %v1349 = vsel %vm1308, %v1288, 0
      %v1352 = vsel %vm1308, %v1289, 0
      %v1355 = vsel %vm1308, %v1290, 0
      %v1358 = vsel %vm1308, %v1291, 0
      %v1361 = vsel %vm1308, %v1292, 0
      %v1364 = vsel %vm1308, %v1293, 0
      %v1367 = vsel %vm1308, %v1294, 0
      %v1370 = vsel %vm1308, %v1295, 0
      %v1373 = vsel %vm1308, %v1296, 0
      %v1376 = vsel %vm1308, %v1297, 0
      %v1379 = vsel %vm1308, %v1298, 0
      %v1382 = vsel %vm1308, %v1299, 0
      %v1385 = vsel %vm1308, %v1300, 0
      %v1388 = vsel %vm1308, %v1301, 0
      %v1391 = vsel %vm1308, %v1302, 0
      %vm1393 = vcmask 1043456
      %v1395 = vsel %vm1393, %v1307, 0
      %1397 = vmatprep.subr.mxu0 0.0
      %1398 = vmatpush1.msra.mxu0 %v1303
      %1399 = vmatprep.subr.mxu0 0.0
      %1400 = vmatpush1.msra.mxu0 %v1304
      %1401 = vmatprep.subr.mxu0 0.0
      %1402 = vmatpush1.msra.mxu0 %v1305
      %1403 = vmatprep.subr.mxu0 0.0
      %1404 = vmatpush1.msra.mxu0 %v1306
      %1405 = vmatprep.subr.mxu0 0.0
      %1406 = vmatpush1.msra.mxu0 %v1395
      %1407 = vmatprep.subr.mxu0 0.0
      %1408 = vmatpush1.msra.mxu0 0.0
      %1409 = vmatprep.subr.mxu0 0.0
      %1410 = vmatpush1.msra.mxu0 0.0
      %1411 = vmatprep.subr.mxu0 0.0
      %1412 = vmatpush1.msra.mxu0 0.0
      %1413 = vmatprep.subr.mxu0 0.0
      %1414 = vmatpush1.msra.mxu0 0.0
      %1415 = vmatprep.subr.mxu0 0.0
      %1416 = vmatpush1.msra.mxu0 0.0
      %1417 = vmatprep.subr.mxu0 0.0
      %1418 = vmatpush1.msra.mxu0 0.0
      %1419 = vmatprep.subr.mxu0 0.0
      %1420 = vmatpush1.msra.mxu0 0.0
      %1421 = vmatprep.subr.mxu0 0.0
      %1422 = vmatpush1.msra.mxu0 0.0
      %1423 = vmatprep.subr.mxu0 0.0
      %1424 = vmatpush1.msra.mxu0 0.0
      %1425 = vmatprep.subr.mxu0 0.0
      %1426 = vmatpush1.msra.mxu0 0.0
      %1427 = vmatprep.subr.mxu0 0.0
      %1428 = vmatpush1.msra.mxu0 0.0
      %1429 = vmatprep.subr.mxu0 0.0
      %1430 = vmatpush1.msra.mxu0 0.0
      %1431 = vmatprep.subr.mxu0 0.0
      %1432 = vmatpush1.msra.mxu0 0.0
      %1433 = vmatprep.subr.mxu0 0.0
      %1434 = vmatpush1.msra.mxu0 0.0
      %1435 = vmatprep.subr.mxu0 0.0
      %1436 = vmatpush1.msra.mxu0 0.0
      %1437 = vmatprep.subr.mxu0 0.0
      %1438 = vmatpush1.msra.mxu0 0.0
      %1439 = vmatprep.subr.mxu0 0.0
      %1440 = vmatpush1.msra.mxu0 0.0
      %1441 = vmatprep.subr.mxu0 0.0
      %1442 = vmatpush1.msra.mxu0 0.0
      %1443 = vmatprep.subr.mxu0 0.0
      %1444 = vmatpush1.msra.mxu0 0.0
      %1445 = vmatprep.subr.mxu0 0.0
      %1446 = vmatpush1.msra.mxu0 0.0
      %1447 = vmatprep.subr.mxu0 0.0
      %1448 = vmatpush1.msra.mxu0 0.0
      %1449 = vmatprep.subr.mxu0 0.0
      %1450 = vmatpush1.msra.mxu0 0.0
      %1451 = vmatprep.subr.mxu0 0.0
      %1452 = vmatpush1.msra.mxu0 0.0
      %1453 = vmatprep.subr.mxu0 0.0
      %1454 = vmatpush1.msra.mxu0 0.0
      %1455 = vmatprep.subr.mxu0 0.0
      %1456 = vmatpush1.msra.mxu0 0.0
      %1457 = vmatprep.subr.mxu0 0.0
      %1458 = vmatpush1.msra.mxu0 0.0
      %1459 = vmatprep.subr.mxu0 0.0
      %1460 = vmatpush1.msra.mxu0 0.0
      %1461 = vmatprep.mubr.f32.mxu0 0.0
      %1462 = vmatmul.mubr.f32.gmra.mrb[0].mxu0 %v1310
      %v1463 = vpop.f32.mrb[0].mxu0
      %v1464 = vadd.f32 0.0, %v1463
      %v1465 = vpop.f32.mrb[0].mxu0
      %1466 = vmatprep.mubr.f32.mxu0 0.0
      %1467 = vmatmul.mubr.f32.gmra.mrb[0].mxu0 %v1313
      %v1468 = vpop.f32.mrb[0].mxu0
      %v1469 = vadd.f32 0.0, %v1468
      %v1470 = vpop.f32.mrb[0].mxu0
      %1471 = vmatprep.mubr.f32.mxu0 0.0
      %1472 = vmatmul.mubr.f32.gmra.mrb[0].mxu0 %v1316
      %v1473 = vpop.f32.mrb[0].mxu0
      %v1474 = vadd.f32 0.0, %v1473
      %v1475 = vpop.f32.mrb[0].mxu0
      %1476 = vmatprep.mubr.f32.mxu0 0.0
      %1477 = vmatmul.mubr.f32.gmra.mrb[0].mxu0 %v1319
      %v1478 = vpop.f32.mrb[0].mxu0
      %v1479 = vadd.f32 0.0, %v1478
      %v1480 = vpop.f32.mrb[0].mxu0
      %1481 = vmatprep.mubr.f32.mxu0 0.0
      %1482 = vmatmul.mubr.f32.gmra.mrb[0].mxu0 %v1322
      %v1483 = vpop.f32.mrb[0].mxu0
      %v1484 = vadd.f32 0.0, %v1483
      %v1485 = vpop.f32.mrb[0].mxu0
      %1486 = vmatprep.mubr.f32.mxu0 0.0
      %1487 = vmatmul.mubr.f32.gmra.mrb[0].mxu0 %v1325
      %v1488 = vpop.f32.mrb[0].mxu0
      %v1489 = vadd.f32 0.0, %v1488
      %v1490 = vpop.f32.mrb[0].mxu0
      %1491 = vmatprep.mubr.f32.mxu0 0.0
      %1492 = vmatmul.mubr.f32.gmra.mrb[0].mxu0 %v1328
      %v1493 = vpop.f32.mrb[0].mxu0
      %v1494 = vadd.f32 0.0, %v1493
      %v1495 = vpop.f32.mrb[0].mxu0
      %1496 = vmatprep.mubr.f32.mxu0 0.0
      %1497 = vmatmul.mubr.f32.gmra.mrb[0].mxu0 %v1331
      %v1498 = vpop.f32.mrb[0].mxu0
      %v1499 = vadd.f32 0.0, %v1498
      %v1500 = vpop.f32.mrb[0].mxu0
      %1501 = vmatprep.mubr.f32.mxu0 0.0
      %1502 = vmatmul.mubr.f32.gmra.mrb[0].mxu0 %v1334
      %v1503 = vpop.f32.mrb[0].mxu0
      %v1504 = vadd.f32 0.0, %v1503
      %v1505 = vpop.f32.mrb[0].mxu0
      %1506 = vmatprep.mubr.f32.mxu0 0.0
      %1507 = vmatmul.mubr.f32.gmra.mrb[0].mxu0 %v1337
      %v1508 = vpop.f32.mrb[0].mxu0
      %v1509 = vadd.f32 0.0, %v1508
      %v1510 = vpop.f32.mrb[0].mxu0
      %1511 = vmatprep.mubr.f32.mxu0 0.0
      %1512 = vmatmul.mubr.f32.gmra.mrb[0].mxu0 %v1340
      %v1513 = vpop.f32.mrb[0].mxu0
      %v1514 = vadd.f32 0.0, %v1513
      %v1515 = vpop.f32.mrb[0].mxu0
      %1516 = vmatprep.mubr.f32.mxu0 0.0
      %1517 = vmatmul.mubr.f32.gmra.mrb[0].mxu0 %v1343
      %v1518 = vpop.f32.mrb[0].mxu0
      %v1519 = vadd.f32 0.0, %v1518
      %v1520 = vpop.f32.mrb[0].mxu0
      %1521 = vmatprep.mubr.f32.mxu0 0.0
      %1522 = vmatmul.mubr.f32.gmra.mrb[0].mxu0 %v1346
      %v1523 = vpop.f32.mrb[0].mxu0
      %v1524 = vadd.f32 0.0, %v1523
      %v1525 = vpop.f32.mrb[0].mxu0
      %1526 = vmatprep.mubr.f32.mxu0 0.0
      %1527 = vmatmul.mubr.f32.gmra.mrb[0].mxu0 %v1349
      %v1528 = vpop.f32.mrb[0].mxu0
      %v1529 = vadd.f32 0.0, %v1528
      %v1530 = vpop.f32.mrb[0].mxu0
      %1531 = vmatprep.mubr.f32.mxu0 0.0
      %1532 = vmatmul.mubr.f32.gmra.mrb[0].mxu0 %v1352
      %v1533 = vpop.f32.mrb[0].mxu0
      %v1534 = vadd.f32 0.0, %v1533
      %v1535 = vpop.f32.mrb[0].mxu0
      %1536 = vmatprep.mubr.f32.mxu0 0.0
      %1537 = vmatmul.mubr.f32.gmra.mrb[0].mxu0 %v1355
      %v1538 = vpop.f32.mrb[0].mxu0
      %v1539 = vadd.f32 0.0, %v1538
      %v1540 = vpop.f32.mrb[0].mxu0
      %1541 = vmatprep.mubr.f32.mxu0 0.0
      %1542 = vmatmul.mubr.f32.gmra.mrb[0].mxu0 %v1358
      %v1543 = vpop.f32.mrb[0].mxu0
      %v1544 = vadd.f32 0.0, %v1543
      %v1545 = vpop.f32.mrb[0].mxu0
      %1546 = vmatprep.mubr.f32.mxu0 0.0
      %1547 = vmatmul.mubr.f32.gmra.mrb[0].mxu0 %v1361
      %v1548 = vpop.f32.mrb[0].mxu0
      %v1549 = vadd.f32 0.0, %v1548
      %v1550 = vpop.f32.mrb[0].mxu0
      %1551 = vmatprep.mubr.f32.mxu0 0.0
      %1552 = vmatmul.mubr.f32.gmra.mrb[0].mxu0 %v1364
      %v1553 = vpop.f32.mrb[0].mxu0
      %v1554 = vadd.f32 0.0, %v1553
      %v1555 = vpop.f32.mrb[0].mxu0
      %1556 = vmatprep.mubr.f32.mxu0 0.0
      %1557 = vmatmul.mubr.f32.gmra.mrb[0].mxu0 %v1367
      %v1558 = vpop.f32.mrb[0].mxu0
      %v1559 = vadd.f32 0.0, %v1558
      %v1560 = vpop.f32.mrb[0].mxu0
      %1561 = vmatprep.mubr.f32.mxu0 0.0
      %1562 = vmatmul.mubr.f32.gmra.mrb[0].mxu0 %v1370
      %v1563 = vpop.f32.mrb[0].mxu0
      %v1564 = vadd.f32 0.0, %v1563
      %v1565 = vpop.f32.mrb[0].mxu0
      %1566 = vmatprep.mubr.f32.mxu0 0.0
      %1567 = vmatmul.mubr.f32.gmra.mrb[0].mxu0 %v1373
      %v1568 = vpop.f32.mrb[0].mxu0
      %v1569 = vadd.f32 0.0, %v1568
      %v1570 = vpop.f32.mrb[0].mxu0
      %1571 = vmatprep.mubr.f32.mxu0 0.0
      %1572 = vmatmul.mubr.f32.gmra.mrb[0].mxu0 %v1376
      %v1573 = vpop.f32.mrb[0].mxu0
      %v1574 = vadd.f32 0.0, %v1573
      %v1575 = vpop.f32.mrb[0].mxu0
      %1576 = vmatprep.mubr.f32.mxu0 0.0
      %1577 = vmatmul.mubr.f32.gmra.mrb[0].mxu0 %v1379
      %v1578 = vpop.f32.mrb[0].mxu0
      %v1579 = vadd.f32 0.0, %v1578
      %v1580 = vpop.f32.mrb[0].mxu0
      %1581 = vmatprep.mubr.f32.mxu0 0.0
      %1582 = vmatmul.mubr.f32.gmra.mrb[0].mxu0 %v1382
      %v1583 = vpop.f32.mrb[0].mxu0
      %v1584 = vadd.f32 0.0, %v1583
      %v1585 = vpop.f32.mrb[0].mxu0
      %1586 = vmatprep.mubr.f32.mxu0 0.0
      %1587 = vmatmul.mubr.f32.gmra.mrb[0].mxu0 %v1385
      %v1588 = vpop.f32.mrb[0].mxu0
      %v1589 = vadd.f32 0.0, %v1588
      %v1590 = vpop.f32.mrb[0].mxu0
      %1591 = vmatprep.mubr.f32.mxu0 0.0
      %1592 = vmatmul.mubr.f32.gmra.mrb[0].mxu0 %v1388
      %v1593 = vpop.f32.mrb[0].mxu0
      %v1594 = vadd.f32 0.0, %v1593
      %v1595 = vpop.f32.mrb[0].mxu0
      %1596 = vmatprep.mubr.f32.mxu0 0.0
      %1597 = vmatmul.mubr.f32.gmra.mrb[0].mxu0 %v1391
      %v1598 = vpop.f32.mrb[0].mxu0
      %v1599 = vadd.f32 0.0, %v1598
      %v1600 = vpop.f32.mrb[0].mxu0
      %1601 = vdwg.mxu0
      %1602 = vst [vmem:[%s204] sm:$0xff] %v1464
      %1603 = vst [vmem:[%s204 + $0x8] sm:$0xff] %v1469
      %1604 = vst [vmem:[%s204 + $0x10] sm:$0xff] %v1474
      %1605 = vst [vmem:[%s204 + $0x18] sm:$0xff] %v1479
      %1606 = vst [vmem:[%s204 + $0x20] sm:$0xff] %v1484
      %1607 = vst [vmem:[%s204 + $0x28] sm:$0xff] %v1489
      %1608 = vst [vmem:[%s204 + $0x30] sm:$0xff] %v1494
      %1609 = vst [vmem:[%s204 + $0x38] sm:$0xff] %v1499
      %1610 = vst [vmem:[%s204 + $0x40] sm:$0xff] %v1504
      %1611 = vst [vmem:[%s204 + $0x48] sm:$0xff] %v1509
      %1612 = vst [vmem:[%s204 + $0x50] sm:$0xff] %v1514
      %1613 = vst [vmem:[%s204 + $0x58] sm:$0xff] %v1519
      %1614 = vst [vmem:[%s204 + $0x60] sm:$0xff] %v1524
      %1615 = vst [vmem:[%s204 + $0x68] sm:$0xff] %v1529
      %1616 = vst [vmem:[%s204 + $0x70] sm:$0xff] %v1534
      %1617 = vst [vmem:[%s204 + $0x78] sm:$0xff] %v1539
      %1618 = vst [vmem:[%s204 + $0x80] sm:$0xff] %v1544
      %1619 = vst [vmem:[%s204 + $0x88] sm:$0xff] %v1549
      %1620 = vst [vmem:[%s204 + $0x90] sm:$0xff] %v1554
      %1621 = vst [vmem:[%s204 + $0x98] sm:$0xff] %v1559
      %1622 = vst [vmem:[%s204 + $0xa0] sm:$0xff] %v1564
      %1623 = vst [vmem:[%s204 + $0xa8] sm:$0xff] %v1569
      %1624 = vst [vmem:[%s204 + $0xb0] sm:$0xff] %v1574
      %1625 = vst [vmem:[%s204 + $0xb8] sm:$0xff] %v1579
      %1626 = vst [vmem:[%s204 + $0xc0] sm:$0xff] %v1584
      %1627 = vst [vmem:[%s204 + $0xc8] sm:$0xff] %v1589
      %1628 = vst [vmem:[%s204 + $0xd0] sm:$0xff] %v1594
      %1629 = vst [vmem:[%s204 + $0xd8] sm:$0xff] %v1599
      %v1630 = vld [vmem:[%s2] sm:$0xff]
      %v1631 = vld [vmem:[%s2 + $0x8] sm:$0xff]
      %v1632 = vld [vmem:[%s2 + $0x10] sm:$0xff]
      %v1633 = vld [vmem:[%s2 + $0x18] sm:$0xff]
      %v1634 = vld [vmem:[%s2 + $0x20] sm:$0xff]
      %v1635 = vld [vmem:[%s2 + $0x28] sm:$0xff]
      %v1636 = vld [vmem:[%s2 + $0x30] sm:$0xff]
      %v1637 = vld [vmem:[%s2 + $0x38] sm:$0xff]
      %v1638 = vld [vmem:[%s2 + $0x40] sm:$0xff]
      %v1639 = vld [vmem:[%s2 + $0x48] sm:$0xff]
      %v1640 = vld [vmem:[%s2 + $0x50] sm:$0xff]
      %v1641 = vld [vmem:[%s2 + $0x58] sm:$0xff]
      %v1642 = vld [vmem:[%s2 + $0x60] sm:$0xff]
      %v1643 = vld [vmem:[%s2 + $0x68] sm:$0xff]
      %v1644 = vld [vmem:[%s2 + $0x70] sm:$0xff]
      %v1645 = vld [vmem:[%s2 + $0x78] sm:$0xff]
      %v1646 = vld [vmem:[%s2 + $0x80] sm:$0xff]
      %v1647 = vld [vmem:[%s2 + $0x88] sm:$0xff]
      %v1648 = vld [vmem:[%s2 + $0x90] sm:$0xff]
      %v1649 = vld [vmem:[%s2 + $0x98] sm:$0xff]
      %v1650 = vld [vmem:[%s2 + $0xa0] sm:$0xff]
      %v1651 = vld [vmem:[%s2 + $0xa8] sm:$0xff]
      %v1652 = vld [vmem:[%s2 + $0xb0] sm:$0xff]
      %v1653 = vld [vmem:[%s2 + $0xb8] sm:$0xff]
      %v1654 = vld [vmem:[%s2 + $0xc0] sm:$0xff]
      %v1655 = vld [vmem:[%s2 + $0xc8] sm:$0xff]
      %v1656 = vld [vmem:[%s2 + $0xd0] sm:$0xff]
      %v1657 = vld [vmem:[%s2 + $0xd8] sm:$0xff]
      %1659 = vset.pattern.permute.xlu0 0
      %1660 = vperm.xlu0 %1659, %v1630
      %v1661 = vpop.permute.xlu0 %1660
      %1664 = vset.pattern.permute.xlu0 0
      %1665 = vperm.xlu0 %1664, %v1631
      %v1666 = vpop.permute.xlu0 %1665
      %1669 = vset.pattern.permute.xlu0 0
      %1670 = vperm.xlu0 %1669, %v1632
      %v1671 = vpop.permute.xlu0 %1670
      %1674 = vset.pattern.permute.xlu0 0
      %1675 = vperm.xlu0 %1674, %v1633
      %v1676 = vpop.permute.xlu0 %1675
      %1679 = vset.pattern.permute.xlu0 0
      %1680 = vperm.xlu0 %1679, %v1634
      %v1681 = vpop.permute.xlu0 %1680
      %1684 = vset.pattern.permute.xlu0 0
      %1685 = vperm.xlu0 %1684, %v1635
      %v1686 = vpop.permute.xlu0 %1685
      %1689 = vset.pattern.permute.xlu0 0
      %1690 = vperm.xlu0 %1689, %v1636
      %v1691 = vpop.permute.xlu0 %1690
      %1694 = vset.pattern.permute.xlu0 0
      %1695 = vperm.xlu0 %1694, %v1637
      %v1696 = vpop.permute.xlu0 %1695
      %1699 = vset.pattern.permute.xlu0 0
      %1700 = vperm.xlu0 %1699, %v1638
      %v1701 = vpop.permute.xlu0 %1700
      %1704 = vset.pattern.permute.xlu0 0
      %1705 = vperm.xlu0 %1704, %v1639
      %v1706 = vpop.permute.xlu0 %1705
      %1709 = vset.pattern.permute.xlu0 0
      %1710 = vperm.xlu0 %1709, %v1640
      %v1711 = vpop.permute.xlu0 %1710
      %1714 = vset.pattern.permute.xlu0 0
      %1715 = vperm.xlu0 %1714, %v1641
      %v1716 = vpop.permute.xlu0 %1715
      %1719 = vset.pattern.permute.xlu0 0
      %1720 = vperm.xlu0 %1719, %v1642
      %v1721 = vpop.permute.xlu0 %1720
      %1724 = vset.pattern.permute.xlu0 0
      %1725 = vperm.xlu0 %1724, %v1643
      %v1726 = vpop.permute.xlu0 %1725
      %1729 = vset.pattern.permute.xlu0 0
      %1730 = vperm.xlu0 %1729, %v1644
      %v1731 = vpop.permute.xlu0 %1730
      %1734 = vset.pattern.permute.xlu0 0
      %1735 = vperm.xlu0 %1734, %v1645
      %v1736 = vpop.permute.xlu0 %1735
      %1739 = vset.pattern.permute.xlu0 0
      %1740 = vperm.xlu0 %1739, %v1646
      %v1741 = vpop.permute.xlu0 %1740
      %1744 = vset.pattern.permute.xlu0 0
      %1745 = vperm.xlu0 %1744, %v1647
      %v1746 = vpop.permute.xlu0 %1745
      %1749 = vset.pattern.permute.xlu0 0
      %1750 = vperm.xlu0 %1749, %v1648
      %v1751 = vpop.permute.xlu0 %1750
      %1754 = vset.pattern.permute.xlu0 0
      %1755 = vperm.xlu0 %1754, %v1649
      %v1756 = vpop.permute.xlu0 %1755
      %1759 = vset.pattern.permute.xlu0 0
      %1760 = vperm.xlu0 %1759, %v1650
      %v1761 = vpop.permute.xlu0 %1760
      %1764 = vset.pattern.permute.xlu0 0
      %1765 = vperm.xlu0 %1764, %v1651
      %v1766 = vpop.permute.xlu0 %1765
      %1769 = vset.pattern.permute.xlu0 0
      %1770 = vperm.xlu0 %1769, %v1652
      %v1771 = vpop.permute.xlu0 %1770
      %1774 = vset.pattern.permute.xlu0 0
      %1775 = vperm.xlu0 %1774, %v1653
      %v1776 = vpop.permute.xlu0 %1775
      %1779 = vset.pattern.permute.xlu0 0
      %1780 = vperm.xlu0 %1779, %v1654
      %v1781 = vpop.permute.xlu0 %1780
      %1784 = vset.pattern.permute.xlu0 0
      %1785 = vperm.xlu0 %1784, %v1655
      %v1786 = vpop.permute.xlu0 %1785
      %1789 = vset.pattern.permute.xlu0 0
      %1790 = vperm.xlu0 %1789, %v1656
      %v1791 = vpop.permute.xlu0 %1790
      %1794 = vset.pattern.permute.xlu0 0
      %1795 = vperm.xlu0 %1794, %v1657
      %v1796 = vpop.permute.xlu0 %1795
      %v1798 = vmul.f32 %v1464, %v1661
      %v1799 = vmul.f32 %v1469, %v1666
      %v1800 = vmul.f32 %v1474, %v1671
      %v1801 = vmul.f32 %v1479, %v1676
      %v1802 = vmul.f32 %v1484, %v1681
      %v1803 = vmul.f32 %v1489, %v1686
      %v1804 = vmul.f32 %v1494, %v1691
      %v1805 = vmul.f32 %v1499, %v1696
      %v1806 = vmul.f32 %v1504, %v1701
      %v1807 = vmul.f32 %v1509, %v1706
      %v1808 = vmul.f32 %v1514, %v1711
      %v1809 = vmul.f32 %v1519, %v1716
      %v1810 = vmul.f32 %v1524, %v1721
      %v1811 = vmul.f32 %v1529, %v1726
      %v1812 = vmul.f32 %v1534, %v1731
      %v1813 = vmul.f32 %v1539, %v1736
      %v1814 = vmul.f32 %v1544, %v1741
      %v1815 = vmul.f32 %v1549, %v1746
      %v1816 = vmul.f32 %v1554, %v1751
      %v1817 = vmul.f32 %v1559, %v1756
      %v1818 = vmul.f32 %v1564, %v1761
      %v1819 = vmul.f32 %v1569, %v1766
      %v1820 = vmul.f32 %v1574, %v1771
      %v1821 = vmul.f32 %v1579, %v1776
      %v1822 = vmul.f32 %v1584, %v1781
      %v1823 = vmul.f32 %v1589, %v1786
      %v1824 = vmul.f32 %v1594, %v1791
      %v1825 = vmul.f32 %v1599, %v1796
      %v1826 = vadd.f32 %v1798, %v1799
      %v1827 = vadd.f32 %v1826, %v1800
      %v1828 = vadd.f32 %v1827, %v1801
      %v1829 = vadd.f32 %v1828, %v1802
      %v1830 = vadd.f32 %v1829, %v1803
      %v1831 = vadd.f32 %v1830, %v1804
      %v1832 = vadd.f32 %v1831, %v1805
      %v1833 = vadd.f32 %v1832, %v1806
      %v1834 = vadd.f32 %v1833, %v1807
      %v1835 = vadd.f32 %v1834, %v1808
      %v1836 = vadd.f32 %v1835, %v1809
      %v1837 = vadd.f32 %v1836, %v1810
      %v1838 = vadd.f32 %v1837, %v1811
      %v1839 = vadd.f32 %v1838, %v1812
      %v1840 = vadd.f32 %v1839, %v1813
      %v1841 = vadd.f32 %v1840, %v1814
      %v1842 = vadd.f32 %v1841, %v1815
      %v1843 = vadd.f32 %v1842, %v1816
      %v1844 = vadd.f32 %v1843, %v1817
      %v1845 = vadd.f32 %v1844, %v1818
      %v1846 = vadd.f32 %v1845, %v1819
      %v1847 = vadd.f32 %v1846, %v1820
      %v1848 = vadd.f32 %v1847, %v1821
      %v1849 = vadd.f32 %v1848, %v1822
      %v1850 = vadd.f32 %v1849, %v1823
      %v1851 = vadd.f32 %v1850, %v1824
      %v1852 = vadd.f32 %v1851, %v1825
      %v1853 = vrot.slane %v1852, 4
      %v1854 = vadd.f32 %v1852, %v1853
      %v1855 = vrot.slane %v1854, 2
      %v1856 = vadd.f32 %v1854, %v1855
      %v1857 = vrot.slane %v1856, 1
      %v1858 = vadd.f32 %v1856, %v1857
      %1859 = vst [vmem:[%s208] sm:$0x1] %v1858
      %v1860 = vmul.f32 %v1798, %v1798
      %v1861 = vmul.f32 %v1799, %v1799
      %v1862 = vmul.f32 %v1800, %v1800
      %v1863 = vmul.f32 %v1801, %v1801
      %v1864 = vmul.f32 %v1802, %v1802
      %v1865 = vmul.f32 %v1803, %v1803
      %v1866 = vmul.f32 %v1804, %v1804
      %v1867 = vmul.f32 %v1805, %v1805
      %v1868 = vmul.f32 %v1806, %v1806
      %v1869 = vmul.f32 %v1807, %v1807
      %v1870 = vmul.f32 %v1808, %v1808
      %v1871 = vmul.f32 %v1809, %v1809
      %v1872 = vmul.f32 %v1810, %v1810
      %v1873 = vmul.f32 %v1811, %v1811
      %v1874 = vmul.f32 %v1812, %v1812
      %v1875 = vmul.f32 %v1813, %v1813
      %v1876 = vmul.f32 %v1814, %v1814
      %v1877 = vmul.f32 %v1815, %v1815
      %v1878 = vmul.f32 %v1816, %v1816
      %v1879 = vmul.f32 %v1817, %v1817
      %v1880 = vmul.f32 %v1818, %v1818
      %v1881 = vmul.f32 %v1819, %v1819
      %v1882 = vmul.f32 %v1820, %v1820
      %v1883 = vmul.f32 %v1821, %v1821
      %v1884 = vmul.f32 %v1822, %v1822
      %v1885 = vmul.f32 %v1823, %v1823
      %v1886 = vmul.f32 %v1824, %v1824
      %v1887 = vmul.f32 %v1825, %v1825
      %v1888 = vadd.f32 %v1860, %v1861
      %v1889 = vadd.f32 %v1888, %v1862
      %v1890 = vadd.f32 %v1889, %v1863
      %v1891 = vadd.f32 %v1890, %v1864
      %v1892 = vadd.f32 %v1891, %v1865
      %v1893 = vadd.f32 %v1892, %v1866
      %v1894 = vadd.f32 %v1893, %v1867
      %v1895 = vadd.f32 %v1894, %v1868
      %v1896 = vadd.f32 %v1895, %v1869
      %v1897 = vadd.f32 %v1896, %v1870
      %v1898 = vadd.f32 %v1897, %v1871
      %v1899 = vadd.f32 %v1898, %v1872
      %v1900 = vadd.f32 %v1899, %v1873
      %v1901 = vadd.f32 %v1900, %v1874
      %v1902 = vadd.f32 %v1901, %v1875
      %v1903 = vadd.f32 %v1902, %v1876
      %v1904 = vadd.f32 %v1903, %v1877
      %v1905 = vadd.f32 %v1904, %v1878
      %v1906 = vadd.f32 %v1905, %v1879
      %v1907 = vadd.f32 %v1906, %v1880
      %v1908 = vadd.f32 %v1907, %v1881
      %v1909 = vadd.f32 %v1908, %v1882
      %v1910 = vadd.f32 %v1909, %v1883
      %v1911 = vadd.f32 %v1910, %v1884
      %v1912 = vadd.f32 %v1911, %v1885
      %v1913 = vadd.f32 %v1912, %v1886
      %v1914 = vadd.f32 %v1913, %v1887
      %v1915 = vrot.slane %v1914, 4
      %v1916 = vadd.f32 %v1914, %v1915
      %v1917 = vrot.slane %v1916, 2
      %v1918 = vadd.f32 %v1916, %v1917
      %v1919 = vrot.slane %v1918, 1
      %v1920 = vadd.f32 %v1918, %v1919
      %1921 = vst [vmem:[%s208 + $0x1] sm:$0x1] %v1920
      %p1922 = scmp.lt.s32.totalorder %s16, 1
      %s1923 = scalar_select %p1922, %s16, 1
      %s1924 = smul.addr %s1923, 28
      %s1925 = smul.addr %s1924, 8
      %s1926 = scalar_lea.vmem %s3, %s1925
      %p1927 = scmp.lt.s32.totalorder %s16, 1
      %s1928 = scalar_select %p1927, %s16, 1
      %s1929 = smul.addr %s1928, 2
      %s1930 = scalar_lea.vmem %s4, %s1929
      // Predicated region
      $region33: #{conv_bn_relu.2} parent=31 // pred_check
        %p1931 = pneg %p102
      $region34: #{conv_bn_relu.2} parent=31 // pred_check_branch
        %1933 = sbr.rel (%p1931) target = $region36
      $region35: #{conv_bn_relu.2} parent=31 // pred_region
        _
      $region36: #{conv_bn_relu.2} parent=31 // pred_fallthru
        _
      // Predicated region
      $region37: #{conv_bn_relu.2} parent=31 // pred_check
        %p1934 = pneg %p128
      $region38: #{conv_bn_relu.2} parent=31 // pred_check_branch
        %1936 = sbr.rel (%p1934) target = $region40
      $region39: #{conv_bn_relu.2} parent=31 // pred_region
        _
      $region40: #{conv_bn_relu.2} parent=31 // pred_fallthru
        _
    $region32: #{conv_bn_relu.2} parent=5 // pred_fallthru
      _
    %p1937 = scmp.le.s32.totalorder 2, %s11
    // Predicated region
    $region41: #{conv_bn_relu.2} parent=5 // pred_check
      %p1938 = pneg %p1937
    $region42: #{conv_bn_relu.2} parent=5 // pred_check_branch
      %1940 = sbr.rel (%p1938) target = $region44
    $region43: #{conv_bn_relu.2} parent=5 // pred_region
      %s1941 = ssub.s32 %s11, 2
      // Predicated region
      $region45: #{conv_bn_relu.2} parent=43 // pred_check
        %p1942 = pneg %p108
      $region46: #{conv_bn_relu.2} parent=43 // pred_check_branch
        %1944 = sbr.rel (%p1942) target = $region48
      $region47: #{conv_bn_relu.2} parent=43 // pred_region
        %p1945 = scmp.lt.s32.totalorder %s17, 1
        %s1946 = scalar_select %p1945, %s17, 1
        %s1947 = smul.addr %s1946, 28
        %s1948 = smul.addr %s1947, 8
        %s1949 = scalar_lea.vmem %s3, %s1948
      $region48: #{conv_bn_relu.2} parent=43 // pred_fallthru
        _
      // Predicated region
      $region49: #{conv_bn_relu.2} parent=43 // pred_check
        %p1950 = pneg %p134
      $region50: #{conv_bn_relu.2} parent=43 // pred_check_branch
        %1952 = sbr.rel (%p1950) target = $region52
      $region51: #{conv_bn_relu.2} parent=43 // pred_region
        %p1953 = scmp.lt.s32.totalorder %s17, 1
        %s1954 = scalar_select %p1953, %s17, 1
        %s1955 = smul.addr %s1954, 2
        %s1956 = scalar_lea.vmem %s4, %s1955
      $region52: #{conv_bn_relu.2} parent=43 // pred_fallthru
        _
    $region44: #{conv_bn_relu.2} parent=5 // pred_fallthru
      _
  $region6: #{conv_bn_relu.2} parent=0 // loop_footer
    %s15 = sadd.s32 1, %s11
  $region7: #{conv_bn_relu.2} parent=0 // loop_footer_branch
    %10 = sbr.rel target = $region3
  $region8: #{conv_bn_relu.2} parent=0 // loop_exit
    _

</llo_original>
